<compile_context>
chip_gen: v7x
topology: tpu7x:2x2x1
jax: 0.10.0
libtpu: 0.0.40
codegen_flags: <defaults>
</compile_context>

<pallas_src>
import functools

import jax
import jax.numpy as jnp
from jax.experimental import pallas as pl
from jax.experimental.pallas import tpu as pltpu


_NEG_BIG = -1e30  # finite "minus infinity" for the bias-baked softmax lane mask


def _round_up(x, m):
    return (x + m - 1) // m * m


def _pick_time_block(seq_len, target):
    """Largest divisor of seq_len that is <= target (keeps the grid exact)."""
    # TODO(synk): ragged last time block (prime seq_len) falls back to small blocks.
    tb = max(1, min(seq_len, target))
    while seq_len % tb:
        tb -= 1
    return tb


def rnn_block_kernel(x_ref, wx_ref, whh_ref, who_ref, b_ref, h0_ref,
                     out_ref, hT_ref, xph_ref, xpo_ref, hprev_ref,
                     *, t_blk, b_tile, h_pad, o_pad, compute_dtype):
    """Processes one (batch-tile, time-block) grid cell.

    x_ref   : (T_blk, b_tile, I)      f32 per-block inputs
    wx_ref  : (I, H_pad + O_pad)      fused input->(hid|logits) weights (resident)
    whh_ref : (H_pad, H_pad)          hidden->hid weights (resident)
    who_ref : (H_pad, O_pad)          hidden->logits weights (resident)
    b_ref   : (1, H_pad + O_pad)      fused bias; padded logit lanes hold -1e30
    h0_ref  : (b_tile, H_pad)         initial hidden (resident)
    out_ref : (T_blk, b_tile, O_pad)  softmax(i2o(combined)) per step
    hT_ref  : (b_tile, H_pad)         recurrent state (resident output accumulator)
    xph_ref / xpo_ref / hprev_ref     VMEM scratch (x-projection, h(t-1) history)
    """
    tb = pl.program_id(1)  # time-block index (axis 0 is the parallel batch tile)

    @pl.when(tb == 0)
    def _():
        hT_ref[...] = h0_ref[...]

    rows = t_blk * b_tile
    in_feat = x_ref.shape[-1]

    # ---- Phase 1: batched input projection for the whole time block (MXU) ----
    # Bias is added once here (hoisted out of the recurrence); it also carries the
    # -1e30 softmax lane mask, so padded lanes exp() to zero for free later.
    x_all = x_ref[...].reshape(rows, in_feat).astype(compute_dtype)
    y = jnp.dot(x_all, wx_ref[...], preferred_element_type=jnp.float32) + b_ref[...]
    xph_ref[...] = y[:, :h_pad]
    xpo_ref[...] = y[:, h_pad:]

    # ---- Phase 2: serial recurrence; only h @ Wh_hid is on the critical path ----
    def step(t, h):
        r0 = pl.multiple_of(t * b_tile, b_tile)
        hprev_ref[pl.ds(r0, b_tile), :] = h                      # h(t-1) for phase 3
        hid = xph_ref[pl.ds(r0, b_tile), :] + jnp.dot(
            h.astype(compute_dtype), whh_ref[...],
            preferred_element_type=jnp.float32)
        return hid                                               # f32 carry

    hT_ref[...] = jax.lax.fori_loop(0, t_blk, step, hT_ref[...], unroll=True)

    # ---- Phase 3: batched i2o logits + softmax over the whole block ----
    logits = xpo_ref[...] + jnp.dot(
        hprev_ref[...].astype(compute_dtype), who_ref[...],
        preferred_element_type=jnp.float32)
    m = jnp.max(logits, axis=1, keepdims=True)
    e = jnp.exp(logits - m)                     # masked lanes: exp(-1e30 - m) -> 0
    denom = jnp.sum(e, axis=1, keepdims=True)
    inv = pl.reciprocal(denom, approx=True)     # EUP vrcp (VALU stays free)
    inv = inv * (2.0 - denom * inv)             # one Newton step -> full f32 accuracy
    out_ref[...] = (e * inv).reshape(t_blk, b_tile, o_pad).astype(out_ref.dtype)


def pack_rnn_params(w_ih, b_ih, w_io, b_io, input_size, *,
                    compute_dtype=jnp.bfloat16):
    """Pack the two nn.Linear layers into fused, lane-padded, MXU-ready slabs.

    Do this ONCE per set of weights (not per forward call).
    w_ih: (I+H, H), b_ih: (H,)   -- i2h (weights stored transposed vs. torch)
    w_io: (I+H, O), b_io: (O,)   -- i2o
    """
    in_feat, H = w_ih.shape
    O = w_io.shape[1]
    I = int(input_size)
    assert in_feat == I + H and w_io.shape[0] == in_feat

    H_pad = _round_up(H, 128)
    O_pad = _round_up(O, 128)
    if (H_pad + O_pad) % 256:
        O_pad += 128          # keep fused N a multiple of the 256-wide v6e/v7x MXU
    N = H_pad + O_pad
    f32 = jnp.float32

    # Columns [0, H) -> i2h, [H_pad, H_pad+O) -> i2o; padded rows/cols are zero so
    # padded hidden lanes stay exactly zero through the recurrence.
    wx = jnp.zeros((I, N), f32)
    wx = wx.at[:, :H].set(w_ih[:I].astype(f32))
    wx = wx.at[:, H_pad:H_pad + O].set(w_io[:I].astype(f32))
    whh = jnp.zeros((H_pad, H_pad), f32).at[:H, :H].set(w_ih[I:].astype(f32))
    who = jnp.zeros((H_pad, O_pad), f32).at[:H, :O].set(w_io[I:].astype(f32))

    # Bias stays f32 and carries the softmax lane mask on padded logit lanes.
    bias = jnp.zeros((1, N), f32)
    bias = bias.at[0, :H].set(b_ih.astype(f32))
    bias = bias.at[0, H_pad:H_pad + O].set(b_io.astype(f32))
    bias = bias.at[0, H_pad + O:].set(_NEG_BIG)

    return dict(
        wx=wx.astype(compute_dtype), whh=whh.astype(compute_dtype),
        who=who.astype(compute_dtype), bias=bias,
        input_size=I, hidden_size=H, output_size=O,
        h_pad=H_pad, o_pad=O_pad, compute_dtype=compute_dtype)


def rnn_sequence_forward(xs, h0, params, *, time_block=16, batch_block=None):
    """Run T consecutive RNN.forward steps inside ONE Pallas kernel.

    xs: (T, B, I) per-step inputs, h0: (B, H) initial hidden, params: pack_rnn_params().
    returns: (outputs (T, B, O), final hidden (B, H))
    """
    T, B, I = xs.shape
    assert I == params["input_size"]
    H, O = params["hidden_size"], params["output_size"]
    H_pad, O_pad = params["h_pad"], params["o_pad"]
    N = H_pad + O_pad
    cdt = params["compute_dtype"]
    f32 = jnp.float32

    B_pad = _round_up(B, 8)                     # f32 sublane multiple
    b_tile = B_pad if batch_block is None else min(batch_block, B_pad)
    b_tile = max(8, b_tile - (b_tile % 8))
    assert B_pad % b_tile == 0
    t_blk = _pick_time_block(T, time_block)
    n_b, n_t = B_pad // b_tile, T // t_blk
    rows = t_blk * b_tile

    # x / out blocks stay f32 so the in-kernel (T_blk, b_tile, ·) <-> (rows, ·) reshapes
    # are pure sublane relabels; operands are cast to compute_dtype inside the kernel.
    x_pad = jnp.zeros((T, B_pad, I), f32).at[:, :B, :].set(xs.astype(f32))
    h0_pad = jnp.zeros((B_pad, H_pad), f32).at[:B, :H].set(h0.astype(f32))

    kernel = functools.partial(
        rnn_block_kernel, t_blk=t_blk, b_tile=b_tile,
        h_pad=H_pad, o_pad=O_pad, compute_dtype=cdt)

    # Explicit VMEM budget (resident weights + double-buffered x/out + scratch).
    dsz = jnp.dtype(cdt).itemsize
    footprint = (
        (I * N + H_pad * H_pad + H_pad * O_pad) * dsz         # resident weight slabs
        + N * 4 + 3 * b_tile * H_pad * 4                      # bias, h0, hT
        + 2 * rows * I * 4 + 2 * rows * O_pad * 4             # x / out double buffers
        + rows * (2 * H_pad + O_pad) * 4)                     # xph / xpo / hprev scratch
    vmem_limit = int(min(64 * 2**20, max(2 * footprint + (2 << 20), 16 * 2**20)))
    # TODO(synk): configs whose resident slab needs >64 MiB (fits only v5e/v6e's 128 MiB)
    # should tile the Wh column dimension instead of raising this cap.

    out_pad, hT_pad = pl.pallas_call(
        kernel,
        out_shape=(
            jax.ShapeDtypeStruct((T, B_pad, O_pad), f32),
            jax.ShapeDtypeStruct((B_pad, H_pad), f32),
        ),
        grid_spec=pltpu.PrefetchScalarGridSpec(
            num_scalar_prefetch=0,
            grid=(n_b, n_t),                                   # (parallel batch, serial time)
            in_specs=[
                pl.BlockSpec((t_blk, b_tile, I), lambda b, t: (t, b, 0)),   # inputs
                pl.BlockSpec((I, N), lambda b, t: (0, 0)),                  # wx: resident
                pl.BlockSpec((H_pad, H_pad), lambda b, t: (0, 0)),          # whh: resident
                pl.BlockSpec((H_pad, O_pad), lambda b, t: (0, 0)),          # who: resident
                pl.BlockSpec((1, N), lambda b, t: (0, 0)),                  # masked bias
                pl.BlockSpec((b_tile, H_pad), lambda b, t: (b, 0)),         # h0
            ],
            out_specs=(
                pl.BlockSpec((t_blk, b_tile, O_pad), lambda b, t: (t, b, 0)),
                pl.BlockSpec((b_tile, H_pad), lambda b, t: (b, 0)),  # resident hidden
            ),
            scratch_shapes=[
                pltpu.VMEM((rows, H_pad), f32),   # x-projection, hid columns
                pltpu.VMEM((rows, O_pad), f32),   # x-projection, logit columns
                pltpu.VMEM((rows, H_pad), f32),   # h(t-1) history for the i2o phase
            ],
        ),
        compiler_params=pltpu.CompilerParams(
            dimension_semantics=("parallel", "arbitrary"),
            vmem_limit_bytes=vmem_limit,
        ),
    )(x_pad, params["wx"], params["whh"], params["who"], params["bias"], h0_pad)

    return out_pad[:, :B, :O], hT_pad[:B, :H]


def rnn_forward(inp, hidden, params):
    """Exact equivalent of RNN.forward(input, hidden) -> (output, hidden)."""
    outs, h_new = rnn_sequence_forward(inp[None], hidden, params, time_block=1)
    return outs[0], h_new


def init_params(key, input_size, hidden_size, output_size):
    """Deterministic synthetic parameters (shapes match nn.Linear, stored transposed)."""
    k1, k2, k3, k4 = jax.random.split(key, 4)
    in_feat = input_size + hidden_size
    w_ih = jax.random.normal(k1, (in_feat, hidden_size), jnp.float32) * 0.1
    b_ih = jax.random.normal(k2, (hidden_size,), jnp.float32) * 0.1
    w_io = jax.random.normal(k3, (in_feat, output_size), jnp.float32) * 0.1
    b_io = jax.random.normal(k4, (output_size,), jnp.float32) * 0.1
    return w_ih, b_ih, w_io, b_io


if __name__ == "__main__":
    batch = 2
    input_size = 16
    hidden_size = 32
    output_size = 8
    seq_len = 8

    key = jax.random.PRNGKey(0)
    k_params, k_x = jax.random.split(key)
    w_ih, b_ih, w_io, b_io = init_params(k_params, input_size, hidden_size, output_size)

    xs = jax.random.normal(k_x, (seq_len, batch, input_size), jnp.float32)
    h0 = jnp.zeros((batch, hidden_size), jnp.float32)   # init_hidden, broadcast to batch

    # Pure-JAX reference of the torch forward, unrolled over the sequence.
    h = h0
    ref_outs = []
    for t in range(seq_len):
        comb = jnp.concatenate([xs[t], h], axis=1)
        new_h = comb @ w_ih + b_ih
        ref_outs.append(jax.nn.softmax(comb @ w_io + b_io, axis=1))
        h = new_h
    ref_outs = jnp.stack(ref_outs)

    # ---- f32 compute path: tight semantics check against the reference ----
    params_f32 = pack_rnn_params(w_ih, b_ih, w_io, b_io, input_size,
                                 compute_dtype=jnp.float32)
    outs32, hT32 = rnn_sequence_forward(xs, h0, params_f32)
    jax.block_until_ready((outs32, hT32))
    assert jnp.allclose(outs32, ref_outs, atol=1e-4, rtol=1e-4), "f32 sequence output mismatch"
    assert jnp.allclose(hT32, h, atol=1e-4, rtol=1e-4), "f32 final hidden mismatch"
    assert jnp.allclose(jnp.sum(outs32, axis=-1), 1.0, atol=1e-4), "softmax not normalized"

    # Single-step path (module-forward equivalent).
    out0, h1 = rnn_forward(xs[0], h0, params_f32)
    jax.block_until_ready((out0, h1))
    assert jnp.allclose(out0, ref_outs[0], atol=1e-4, rtol=1e-4), "single-step output mismatch"
    assert jnp.allclose(h1, xs[0] @ w_ih[:input_size] + h0 @ w_ih[input_size:] + b_ih,
                        atol=1e-4, rtol=1e-4), "single-step hidden mismatch"

    # ---- bf16 MXU-operand path (performance default): loose-tolerance check ----
    params_bf16 = pack_rnn_params(w_ih, b_ih, w_io, b_io, input_size)   # bf16 default
    outs16, hT16 = rnn_sequence_forward(xs, h0, params_bf16)
    jax.block_until_ready((outs16, hT16))
    assert jnp.allclose(outs16, ref_outs, atol=4e-2), "bf16 sequence output mismatch"
    assert jnp.allclose(hT16, h, atol=1e-1), "bf16 final hidden mismatch"
    assert jnp.allclose(jnp.sum(outs16, axis=-1), 1.0, atol=1e-3), "bf16 softmax not normalized"

    print("KERNEL_OK")
</pallas_src>

<mosaic_0001>
module attributes {stable_mosaic.version = 11 : i64} {
  func.func @rnn_block_kernel(%arg0: i32, %arg1: i32, %arg2: memref<8x8x16xf32, #tpu.memory_space<vmem>>, %arg3: memref<16x256xf32, #tpu.memory_space<vmem>>, %arg4: memref<128x128xf32, #tpu.memory_space<vmem>>, %arg5: memref<128x128xf32, #tpu.memory_space<vmem>>, %arg6: memref<1x256xf32, #tpu.memory_space<vmem>>, %arg7: memref<8x128xf32, #tpu.memory_space<vmem>>, %arg8: memref<8x8x128xf32, #tpu.memory_space<vmem>>, %arg9: memref<8x128xf32, #tpu.memory_space<vmem>>, %arg10: memref<64x128xf32, #tpu.memory_space<vmem>>, %arg11: memref<64x128xf32, #tpu.memory_space<vmem>>, %arg12: memref<64x128xf32, #tpu.memory_space<vmem>>) attributes {dimension_semantics = [#tpu.dimension_semantics<parallel>, #tpu.dimension_semantics<arbitrary>], iteration_bounds = array<i64: 1, 1>, scalar_prefetch = 0 : i64, scratch_operands = 3 : i64, tpu.core_type = #tpu.core_type<tc>, window_params = [{transform_indices = @transform_0, window_bounds = array<i64: 8, 8, 16>}, {pipeline_mode = #tpu.pipeline_mode<synchronous>, transform_indices = @transform_1, window_bounds = array<i64: 16, 256>}, {pipeline_mode = #tpu.pipeline_mode<synchronous>, transform_indices = @transform_2, window_bounds = array<i64: 128, 128>}, {pipeline_mode = #tpu.pipeline_mode<synchronous>, transform_indices = @transform_3, window_bounds = array<i64: 128, 128>}, {pipeline_mode = #tpu.pipeline_mode<synchronous>, transform_indices = @transform_4, window_bounds = array<i64: 1, 256>}, {transform_indices = @transform_5, window_bounds = array<i64: 8, 128>}, {transform_indices = @transform_6, window_bounds = array<i64: 8, 8, 128>}, {transform_indices = @transform_7, window_bounds = array<i64: 8, 128>}]} {
    %c0_i32 = arith.constant 0 : i32
    %0 = arith.cmpi eq, %arg1, %c0_i32 : i32
    %1 = arith.extui %0 : i1 to i32
    %c0_i32_0 = arith.constant 0 : i32
    %2 = arith.cmpi ne, %1, %c0_i32_0 : i32
    scf.if %2 {
      %c0_77 = arith.constant 0 : index
      %c0_78 = arith.constant 0 : index
      %109 = vector.load %arg7[%c0_77, %c0_78] : memref<8x128xf32, #tpu.memory_space<vmem>>, vector<8x128xf32>
      %c0_79 = arith.constant 0 : index
      %c0_80 = arith.constant 0 : index
      %110 = vector.load %arg9[%c0_79, %c0_80] : memref<8x128xf32, #tpu.memory_space<vmem>>, vector<8x128xf32>
      tpu.vector_store %arg9[%c0_79, %c0_80], %109 {strides = array<i32>} : memref<8x128xf32, #tpu.memory_space<vmem>>, vector<8x128xf32>,
    } else {
    }
    %c0 = arith.constant 0 : index
    %c0_1 = arith.constant 0 : index
    %c0_2 = arith.constant 0 : index
    %3 = vector.load %arg2[%c0, %c0_1, %c0_2] : memref<8x8x16xf32, #tpu.memory_space<vmem>>, vector<8x8x16xf32>
    %4 = vector.shape_cast %3 : vector<8x8x16xf32> to vector<64x16xf32>
    %c0_3 = arith.constant 0 : index
    %c0_4 = arith.constant 0 : index
    %5 = vector.load %arg3[%c0_3, %c0_4] : memref<16x256xf32, #tpu.memory_space<vmem>>, vector<16x256xf32>
    %cst = arith.constant dense<0.000000e+00> : vector<64x256xf32>
    %6 = tpu.matmul %4, %5, %cst {dimension_numbers = #tpu.dot_dimension_numbers<[1], [0], [0], [1], [0, 0, 1, 1], [], []>} : vector<64x16xf32>, vector<16x256xf32>, vector<64x256xf32> -> vector<64x256xf32>
    %c0_5 = arith.constant 0 : index
    %c0_6 = arith.constant 0 : index
    %7 = vector.load %arg6[%c0_5, %c0_6] : memref<1x256xf32, #tpu.memory_space<vmem>>, vector<1x256xf32>
    %8 = vector.broadcast %7 : vector<1x256xf32> to vector<64x256xf32>
    %9 = arith.addf %6, %8 : vector<64x256xf32>
    %10 = vector.extract_strided_slice %9 {offsets = [0, 0], sizes = [64, 128], strides = [1, 1]} : vector<64x256xf32> to vector<64x128xf32>
    %c0_7 = arith.constant 0 : index
    %c0_8 = arith.constant 0 : index
    %11 = vector.load %arg10[%c0_7, %c0_8] : memref<64x128xf32, #tpu.memory_space<vmem>>, vector<64x128xf32>
    tpu.vector_store %arg10[%c0_7, %c0_8], %10 {strides = array<i32>} : memref<64x128xf32, #tpu.memory_space<vmem>>, vector<64x128xf32>,
    %12 = vector.extract_strided_slice %9 {offsets = [0, 128], sizes = [64, 128], strides = [1, 1]} : vector<64x256xf32> to vector<64x128xf32>
    %c0_9 = arith.constant 0 : index
    %c0_10 = arith.constant 0 : index
    %13 = vector.load %arg11[%c0_9, %c0_10] : memref<64x128xf32, #tpu.memory_space<vmem>>, vector<64x128xf32>
    tpu.vector_store %arg11[%c0_9, %c0_10], %12 {strides = array<i32>} : memref<64x128xf32, #tpu.memory_space<vmem>>, vector<64x128xf32>,
    %c0_11 = arith.constant 0 : index
    %c0_12 = arith.constant 0 : index
    %14 = vector.load %arg9[%c0_11, %c0_12] : memref<8x128xf32, #tpu.memory_space<vmem>>, vector<8x128xf32>
    %c0_i32_13 = arith.constant 0 : i32
    %c8_i32 = arith.constant 8 : i32
    %15 = arith.muli %c0_i32_13, %c8_i32 : i32
    %16 = tpu.assume_multiple %15, 8 : i32
    %17 = arith.index_cast %16 : i32 to index
    %c0_14 = arith.constant 0 : index
    %18 = vector.load %arg12[%17, %c0_14] : memref<64x128xf32, #tpu.memory_space<vmem>>, vector<8x128xf32>
    tpu.vector_store %arg12[%17, %c0_14], %14 {strides = array<i32>} : memref<64x128xf32, #tpu.memory_space<vmem>>, vector<8x128xf32>,
    %19 = arith.index_cast %16 : i32 to index
    %c0_15 = arith.constant 0 : index
    %20 = vector.load %arg10[%19, %c0_15] : memref<64x128xf32, #tpu.memory_space<vmem>>, vector<8x128xf32>
    %c0_16 = arith.constant 0 : index
    %c0_17 = arith.constant 0 : index
    %21 = vector.load %arg4[%c0_16, %c0_17] : memref<128x128xf32, #tpu.memory_space<vmem>>, vector<128x128xf32>
    %cst_18 = arith.constant dense<0.000000e+00> : vector<8x128xf32>
    %22 = tpu.matmul %14, %21, %cst_18 {dimension_numbers = #tpu.dot_dimension_numbers<[1], [0], [0], [1], [0, 0, 1, 1], [], []>} : vector<8x128xf32>, vector<128x128xf32>, vector<8x128xf32> -> vector<8x128xf32>
    %23 = arith.addf %20, %22 : vector<8x128xf32>
    %c1_i32 = arith.constant 1 : i32
    %c8_i32_19 = arith.constant 8 : i32
    %24 = arith.muli %c1_i32, %c8_i32_19 : i32
    %25 = tpu.assume_multiple %24, 8 : i32
    %26 = arith.index_cast %25 : i32 to index
    %c0_20 = arith.constant 0 : index
    %27 = vector.load %arg12[%26, %c0_20] : memref<64x128xf32, #tpu.memory_space<vmem>>, vector<8x128xf32>
    tpu.vector_store %arg12[%26, %c0_20], %23 {strides = array<i32>} : memref<64x128xf32, #tpu.memory_space<vmem>>, vector<8x128xf32>,
    %28 = arith.index_cast %25 : i32 to index
    %c0_21 = arith.constant 0 : index
    %29 = vector.load %arg10[%28, %c0_21] : memref<64x128xf32, #tpu.memory_space<vmem>>, vector<8x128xf32>
    %c0_22 = arith.constant 0 : index
    %c0_23 = arith.constant 0 : index
    %30 = vector.load %arg4[%c0_22, %c0_23] : memref<128x128xf32, #tpu.memory_space<vmem>>, vector<128x128xf32>
    %cst_24 = arith.constant dense<0.000000e+00> : vector<8x128xf32>
    %31 = tpu.matmul %23, %30, %cst_24 {dimension_numbers = #tpu.dot_dimension_numbers<[1], [0], [0], [1], [0, 0, 1, 1], [], []>} : vector<8x128xf32>, vector<128x128xf32>, vector<8x128xf32> -> vector<8x128xf32>
    %32 = arith.addf %29, %31 : vector<8x128xf32>
    %c2_i32 = arith.constant 2 : i32
    %c8_i32_25 = arith.constant 8 : i32
    %33 = arith.muli %c2_i32, %c8_i32_25 : i32
    %34 = tpu.assume_multiple %33, 8 : i32
    %35 = arith.index_cast %34 : i32 to index
    %c0_26 = arith.constant 0 : index
    %36 = vector.load %arg12[%35, %c0_26] : memref<64x128xf32, #tpu.memory_space<vmem>>, vector<8x128xf32>
    tpu.vector_store %arg12[%35, %c0_26], %32 {strides = array<i32>} : memref<64x128xf32, #tpu.memory_space<vmem>>, vector<8x128xf32>,
    %37 = arith.index_cast %34 : i32 to index
    %c0_27 = arith.constant 0 : index
    %38 = vector.load %arg10[%37, %c0_27] : memref<64x128xf32, #tpu.memory_space<vmem>>, vector<8x128xf32>
    %c0_28 = arith.constant 0 : index
    %c0_29 = arith.constant 0 : index
    %39 = vector.load %arg4[%c0_28, %c0_29] : memref<128x128xf32, #tpu.memory_space<vmem>>, vector<128x128xf32>
    %cst_30 = arith.constant dense<0.000000e+00> : vector<8x128xf32>
    %40 = tpu.matmul %32, %39, %cst_30 {dimension_numbers = #tpu.dot_dimension_numbers<[1], [0], [0], [1], [0, 0, 1, 1], [], []>} : vector<8x128xf32>, vector<128x128xf32>, vector<8x128xf32> -> vector<8x128xf32>
    %41 = arith.addf %38, %40 : vector<8x128xf32>
    %c3_i32 = arith.constant 3 : i32
    %c8_i32_31 = arith.constant 8 : i32
    %42 = arith.muli %c3_i32, %c8_i32_31 : i32
    %43 = tpu.assume_multiple %42, 8 : i32
    %44 = arith.index_cast %43 : i32 to index
    %c0_32 = arith.constant 0 : index
    %45 = vector.load %arg12[%44, %c0_32] : memref<64x128xf32, #tpu.memory_space<vmem>>, vector<8x128xf32>
    tpu.vector_store %arg12[%44, %c0_32], %41 {strides = array<i32>} : memref<64x128xf32, #tpu.memory_space<vmem>>, vector<8x128xf32>,
    %46 = arith.index_cast %43 : i32 to index
    %c0_33 = arith.constant 0 : index
    %47 = vector.load %arg10[%46, %c0_33] : memref<64x128xf32, #tpu.memory_space<vmem>>, vector<8x128xf32>
    %c0_34 = arith.constant 0 : index
    %c0_35 = arith.constant 0 : index
    %48 = vector.load %arg4[%c0_34, %c0_35] : memref<128x128xf32, #tpu.memory_space<vmem>>, vector<128x128xf32>
    %cst_36 = arith.constant dense<0.000000e+00> : vector<8x128xf32>
    %49 = tpu.matmul %41, %48, %cst_36 {dimension_numbers = #tpu.dot_dimension_numbers<[1], [0], [0], [1], [0, 0, 1, 1], [], []>} : vector<8x128xf32>, vector<128x128xf32>, vector<8x128xf32> -> vector<8x128xf32>
    %50 = arith.addf %47, %49 : vector<8x128xf32>
    %c4_i32 = arith.constant 4 : i32
    %c8_i32_37 = arith.constant 8 : i32
    %51 = arith.muli %c4_i32, %c8_i32_37 : i32
    %52 = tpu.assume_multiple %51, 8 : i32
    %53 = arith.index_cast %52 : i32 to index
    %c0_38 = arith.constant 0 : index
    %54 = vector.load %arg12[%53, %c0_38] : memref<64x128xf32, #tpu.memory_space<vmem>>, vector<8x128xf32>
    tpu.vector_store %arg12[%53, %c0_38], %50 {strides = array<i32>} : memref<64x128xf32, #tpu.memory_space<vmem>>, vector<8x128xf32>,
    %55 = arith.index_cast %52 : i32 to index
    %c0_39 = arith.constant 0 : index
    %56 = vector.load %arg10[%55, %c0_39] : memref<64x128xf32, #tpu.memory_space<vmem>>, vector<8x128xf32>
    %c0_40 = arith.constant 0 : index
    %c0_41 = arith.constant 0 : index
    %57 = vector.load %arg4[%c0_40, %c0_41] : memref<128x128xf32, #tpu.memory_space<vmem>>, vector<128x128xf32>
    %cst_42 = arith.constant dense<0.000000e+00> : vector<8x128xf32>
    %58 = tpu.matmul %50, %57, %cst_42 {dimension_numbers = #tpu.dot_dimension_numbers<[1], [0], [0], [1], [0, 0, 1, 1], [], []>} : vector<8x128xf32>, vector<128x128xf32>, vector<8x128xf32> -> vector<8x128xf32>
    %59 = arith.addf %56, %58 : vector<8x128xf32>
    %c5_i32 = arith.constant 5 : i32
    %c8_i32_43 = arith.constant 8 : i32
    %60 = arith.muli %c5_i32, %c8_i32_43 : i32
    %61 = tpu.assume_multiple %60, 8 : i32
    %62 = arith.index_cast %61 : i32 to index
    %c0_44 = arith.constant 0 : index
    %63 = vector.load %arg12[%62, %c0_44] : memref<64x128xf32, #tpu.memory_space<vmem>>, vector<8x128xf32>
    tpu.vector_store %arg12[%62, %c0_44], %59 {strides = array<i32>} : memref<64x128xf32, #tpu.memory_space<vmem>>, vector<8x128xf32>,
    %64 = arith.index_cast %61 : i32 to index
    %c0_45 = arith.constant 0 : index
    %65 = vector.load %arg10[%64, %c0_45] : memref<64x128xf32, #tpu.memory_space<vmem>>, vector<8x128xf32>
    %c0_46 = arith.constant 0 : index
    %c0_47 = arith.constant 0 : index
    %66 = vector.load %arg4[%c0_46, %c0_47] : memref<128x128xf32, #tpu.memory_space<vmem>>, vector<128x128xf32>
    %cst_48 = arith.constant dense<0.000000e+00> : vector<8x128xf32>
    %67 = tpu.matmul %59, %66, %cst_48 {dimension_numbers = #tpu.dot_dimension_numbers<[1], [0], [0], [1], [0, 0, 1, 1], [], []>} : vector<8x128xf32>, vector<128x128xf32>, vector<8x128xf32> -> vector<8x128xf32>
    %68 = arith.addf %65, %67 : vector<8x128xf32>
    %c6_i32 = arith.constant 6 : i32
    %c8_i32_49 = arith.constant 8 : i32
    %69 = arith.muli %c6_i32, %c8_i32_49 : i32
    %70 = tpu.assume_multiple %69, 8 : i32
    %71 = arith.index_cast %70 : i32 to index
    %c0_50 = arith.constant 0 : index
    %72 = vector.load %arg12[%71, %c0_50] : memref<64x128xf32, #tpu.memory_space<vmem>>, vector<8x128xf32>
    tpu.vector_store %arg12[%71, %c0_50], %68 {strides = array<i32>} : memref<64x128xf32, #tpu.memory_space<vmem>>, vector<8x128xf32>,
    %73 = arith.index_cast %70 : i32 to index
    %c0_51 = arith.constant 0 : index
    %74 = vector.load %arg10[%73, %c0_51] : memref<64x128xf32, #tpu.memory_space<vmem>>, vector<8x128xf32>
    %c0_52 = arith.constant 0 : index
    %c0_53 = arith.constant 0 : index
    %75 = vector.load %arg4[%c0_52, %c0_53] : memref<128x128xf32, #tpu.memory_space<vmem>>, vector<128x128xf32>
    %cst_54 = arith.constant dense<0.000000e+00> : vector<8x128xf32>
    %76 = tpu.matmul %68, %75, %cst_54 {dimension_numbers = #tpu.dot_dimension_numbers<[1], [0], [0], [1], [0, 0, 1, 1], [], []>} : vector<8x128xf32>, vector<128x128xf32>, vector<8x128xf32> -> vector<8x128xf32>
    %77 = arith.addf %74, %76 : vector<8x128xf32>
    %c7_i32 = arith.constant 7 : i32
    %c8_i32_55 = arith.constant 8 : i32
    %78 = arith.muli %c7_i32, %c8_i32_55 : i32
    %79 = tpu.assume_multiple %78, 8 : i32
    %80 = arith.index_cast %79 : i32 to index
    %c0_56 = arith.constant 0 : index
    %81 = vector.load %arg12[%80, %c0_56] : memref<64x128xf32, #tpu.memory_space<vmem>>, vector<8x128xf32>
    tpu.vector_store %arg12[%80, %c0_56], %77 {strides = array<i32>} : memref<64x128xf32, #tpu.memory_space<vmem>>, vector<8x128xf32>,
    %82 = arith.index_cast %79 : i32 to index
    %c0_57 = arith.constant 0 : index
    %83 = vector.load %arg10[%82, %c0_57] : memref<64x128xf32, #tpu.memory_space<vmem>>, vector<8x128xf32>
    %c0_58 = arith.constant 0 : index
    %c0_59 = arith.constant 0 : index
    %84 = vector.load %arg4[%c0_58, %c0_59] : memref<128x128xf32, #tpu.memory_space<vmem>>, vector<128x128xf32>
    %cst_60 = arith.constant dense<0.000000e+00> : vector<8x128xf32>
    %85 = tpu.matmul %77, %84, %cst_60 {dimension_numbers = #tpu.dot_dimension_numbers<[1], [0], [0], [1], [0, 0, 1, 1], [], []>} : vector<8x128xf32>, vector<128x128xf32>, vector<8x128xf32> -> vector<8x128xf32>
    %86 = arith.addf %83, %85 : vector<8x128xf32>
    %c8_i32_61 = arith.constant 8 : i32
    %c0_62 = arith.constant 0 : index
    %c0_63 = arith.constant 0 : index
    %87 = vector.load %arg9[%c0_62, %c0_63] : memref<8x128xf32, #tpu.memory_space<vmem>>, vector<8x128xf32>
    tpu.vector_store %arg9[%c0_62, %c0_63], %86 {strides = array<i32>} : memref<8x128xf32, #tpu.memory_space<vmem>>, vector<8x128xf32>,
    %c0_64 = arith.constant 0 : index
    %c0_65 = arith.constant 0 : index
    %88 = vector.load %arg11[%c0_64, %c0_65] : memref<64x128xf32, #tpu.memory_space<vmem>>, vector<64x128xf32>
    %c0_66 = arith.constant 0 : index
    %c0_67 = arith.constant 0 : index
    %89 = vector.load %arg12[%c0_66, %c0_67] : memref<64x128xf32, #tpu.memory_space<vmem>>, vector<64x128xf32>
    %c0_68 = arith.constant 0 : index
    %c0_69 = arith.constant 0 : index
    %90 = vector.load %arg5[%c0_68, %c0_69] : memref<128x128xf32, #tpu.memory_space<vmem>>, vector<128x128xf32>
    %cst_70 = arith.constant dense<0.000000e+00> : vector<64x128xf32>
    %91 = tpu.matmul %89, %90, %cst_70 {dimension_numbers = #tpu.dot_dimension_numbers<[1], [0], [0], [1], [0, 0, 1, 1], [], []>} : vector<64x128xf32>, vector<128x128xf32>, vector<64x128xf32> -> vector<64x128xf32>
    %92 = arith.addf %88, %91 : vector<64x128xf32>
    %cst_71 = arith.constant dense<0xFF800000> : vector<64xf32>
    %93 = vector.multi_reduction <maximumf>, %92, %cst_71 [1] : vector<64x128xf32> to vector<64xf32>
    %94 = vector.shape_cast %93 : vector<64xf32> to vector<64x1xf32>
    %95 = vector.broadcast %94 : vector<64x1xf32> to vector<64x128xf32>
    %96 = arith.subf %92, %95 : vector<64x128xf32>
    %97 = math.exp %96 : vector<64x128xf32>
    %cst_72 = arith.constant dense<0.000000e+00> : vector<64xf32>
    %98 = vector.multi_reduction <add>, %97, %cst_72 [1] : vector<64x128xf32> to vector<64xf32>
    %99 = vector.shape_cast %98 : vector<64xf32> to vector<64x1xf32>
    %100 = tpu.reciprocal %99 {approx = true} : vector<64x1xf32> -> vector<64x1xf32>
    %101 = arith.mulf %99, %100 : vector<64x1xf32>
    %cst_73 = arith.constant 2.000000e+00 : f32
    %102 = vector.broadcast %cst_73 : f32 to vector<64x1xf32>
    %103 = arith.subf %102, %101 : vector<64x1xf32>
    %104 = arith.mulf %100, %103 : vector<64x1xf32>
    %105 = vector.broadcast %104 : vector<64x1xf32> to vector<64x128xf32>
    %106 = arith.mulf %97, %105 : vector<64x128xf32>
    %107 = vector.shape_cast %106 : vector<64x128xf32> to vector<8x8x128xf32>
    %c0_74 = arith.constant 0 : index
    %c0_75 = arith.constant 0 : index
    %c0_76 = arith.constant 0 : index
    %108 = vector.load %arg8[%c0_74, %c0_75, %c0_76] : memref<8x8x128xf32, #tpu.memory_space<vmem>>, vector<8x8x128xf32>
    tpu.vector_store %arg8[%c0_74, %c0_75, %c0_76], %107 {strides = array<i32>} : memref<8x8x128xf32, #tpu.memory_space<vmem>>, vector<8x8x128xf32>,
    return
  }
  func.func @transform_0(%arg0: i32, %arg1: i32) -> (i32, i32, i32) {
    %c0_i32 = arith.constant 0 : i32
    %c0_i32_0 = arith.constant 0 : i32
    return %arg1, %arg0, %c0_i32 : i32, i32, i32
  }
  func.func @transform_1(%arg0: i32, %arg1: i32) -> (i32, i32) {
    %c0_i32 = arith.constant 0 : i32
    %c0_i32_0 = arith.constant 0 : i32
    %c0_i32_1 = arith.constant 0 : i32
    return %c0_i32, %c0_i32_0 : i32, i32
  }
  func.func @transform_2(%arg0: i32, %arg1: i32) -> (i32, i32) {
    %c0_i32 = arith.constant 0 : i32
    %c0_i32_0 = arith.constant 0 : i32
    %c0_i32_1 = arith.constant 0 : i32
    return %c0_i32, %c0_i32_0 : i32, i32
  }
  func.func @transform_3(%arg0: i32, %arg1: i32) -> (i32, i32) {
    %c0_i32 = arith.constant 0 : i32
    %c0_i32_0 = arith.constant 0 : i32
    %c0_i32_1 = arith.constant 0 : i32
    return %c0_i32, %c0_i32_0 : i32, i32
  }
  func.func @transform_4(%arg0: i32, %arg1: i32) -> (i32, i32) {
    %c0_i32 = arith.constant 0 : i32
    %c0_i32_0 = arith.constant 0 : i32
    %c0_i32_1 = arith.constant 0 : i32
    return %c0_i32, %c0_i32_0 : i32, i32
  }
  func.func @transform_5(%arg0: i32, %arg1: i32) -> (i32, i32) {
    %c0_i32 = arith.constant 0 : i32
    %c0_i32_0 = arith.constant 0 : i32
    return %arg0, %c0_i32 : i32, i32
  }
  func.func @transform_6(%arg0: i32, %arg1: i32) -> (i32, i32, i32) {
    %c0_i32 = arith.constant 0 : i32
    %c0_i32_0 = arith.constant 0 : i32
    return %arg1, %arg0, %c0_i32 : i32, i32, i32
  }
  func.func @transform_7(%arg0: i32, %arg1: i32) -> (i32, i32) {
    %c0_i32 = arith.constant 0 : i32
    %c0_i32_0 = arith.constant 0 : i32
    return %arg0, %c0_i32 : i32, i32
  }
}

</mosaic_0001>

<llo_original>
// kernel: tpu_custom_call.1
$region0: #{tpu_custom_call.1}
  #allocation0 [shape = 'u32[]', space=smem, size = 0x4, offset = 0x4, fixed_abs, tag = 'smem constant byte address 0x4 - core index']
  #allocation1 [shape = 'u32[144,128]{1,0:T(1,128)}', space=vmem, size = 0x12000, scoped, tag = 'internal scratch']
  #allocation2 [shape = 'f32[64,128]{1,0:T(8,128)}', space=vmem, size = 0x8000, scoped, tag = 'scratch operand']
  #allocation3 [shape = 'f32[64,128]{1,0:T(8,128)}', space=vmem, size = 0x8000, scoped, tag = 'scratch operand']
  #allocation4 [shape = 'f32[64,128]{1,0:T(8,128)}', space=vmem, size = 0x8000, scoped, tag = 'scratch operand']
  %s0 = inlined_call_operand.hbm [shape: f32[8,8,16], index: 0, kind: input, shape index: {}]
  %s1 = inlined_call_operand.hbm [shape: f32[16,256], index: 1, kind: input, shape index: {}]
  %s2 = inlined_call_operand.hbm [shape: f32[128,128], index: 2, kind: input, shape index: {}]
  %s3 = inlined_call_operand.hbm [shape: f32[128,128], index: 3, kind: input, shape index: {}]
  %s4 = inlined_call_operand.vmem [shape: f32[1,256], index: 4, kind: input, shape index: {}]
  %s5 = inlined_call_operand.vmem [shape: f32[8,128], index: 5, kind: input, shape index: {}]
  %s6 = inlined_call_operand.hbm [shape: f32[8,8,128], index: 6, kind: output, shape index: {0}]
  %s7 = inlined_call_operand.hbm [shape: f32[8,128], index: 7, kind: output, shape index: {1}]
  %8 = xla_tuple %s6, %s7
  %s9 = sld [smem:[#allocation0]]
  $region62: #{tpu_custom_call.1} parent=0
    _
  %s11 = ssub.s32 1, %s9
  %s12 = scalar_select 0, %s11, %s9
  $region1: #{tpu_custom_call.1} parent=0
    #allocation5 [shape = 'u8[32768]{0}', space=vmem, size = 0x8000, scoped, tag = 'input window, operand 0, single buffered']
    #allocation6 [shape = 's32[1]{0}', space=sflag, size = 0x4, scoped, tag = 'scoped memory for tpu_custom_call.1']
    #allocation7 [shape = 's32[1]{0}', space=sflag, size = 0x4, scoped, tag = 'scoped memory for tpu_custom_call.1']
    #allocation8 [shape = 'u8[16384]{0}', space=vmem, size = 0x4000, scoped, tag = 'input window, operand 1, single buffered']
    #allocation9 [shape = 's32[1]{0}', space=sflag, size = 0x4, scoped, tag = 'scoped memory for tpu_custom_call.1']
    #allocation10 [shape = 'u8[65536]{0}', space=vmem, size = 0x10000, scoped, tag = 'input window, operand 2, single buffered']
    #allocation11 [shape = 'u8[65536]{0}', space=vmem, size = 0x10000, scoped, tag = 'input window, operand 3, single buffered']
    #allocation12 [shape = 's32[1]{0}', space=sflag, size = 0x4, scoped, tag = 'scoped memory for tpu_custom_call.1']
    #allocation13 [shape = 'u8[32768]{0}', space=vmem, size = 0x8000, scoped, tag = 'output window, operand 0, single buffered']
    #allocation14 [shape = 'u8[4096]{0}', space=vmem, size = 0x1000, scoped, tag = 'output window, operand 1, single buffered']
    #allocation15 [shape = 's32[1]{0}', space=sflag, size = 0x4, scoped, tag = 'scoped memory for tpu_custom_call.1']
    %13 = vsyncpa [#allocation6], 0
    %14 = vsyncpa [#allocation9], 0
    %15 = vsyncpa [#allocation12], 0
    %16 = vsyncpa [#allocation7], 0
    %17 = vsyncpa [#allocation15], 0
    // Predicated region
    $region2: #{tpu_custom_call.1} parent=1 // pred_check
      _
    $region3: #{tpu_custom_call.1} parent=1 // pred_check_branch
      %19 = sbr.rel (0) target = $region5
    $region4: #{tpu_custom_call.1} parent=1 // pred_region
      %s21 = ssub.s32 1024, 1024
      %22 = vsyncadd [#allocation6], %s21
      %s23 = sshll.u32 [#allocation5], 4
      %s24 = int_to_ptr.vmem [resolvable:$true] %s23
      %29 = dma.hbm_to_vmem [thread:$0]  %s0, 1024, %s24, [#allocation6], 128, 128, 8
    $region5: #{tpu_custom_call.1} parent=1 // pred_fallthru
      _
    // Predicated region
    $region6: #{tpu_custom_call.1} parent=1 // pred_check
      _
    $region7: #{tpu_custom_call.1} parent=1 // pred_check_branch
      %31 = sbr.rel (0) target = $region9
    $region8: #{tpu_custom_call.1} parent=1 // pred_region
      %s33 = ssub.s32 512, 512
      %34 = vsyncadd [#allocation9], %s33
      %s35 = sshll.u32 [#allocation8], 4
      %s36 = int_to_ptr.vmem [resolvable:$true] %s35
      %41 = dma.hbm_to_vmem [thread:$0]  %s1, 512, %s36, [#allocation9], 256, 256, 16
    $region9: #{tpu_custom_call.1} parent=1 // pred_fallthru
      _
    // Predicated region
    $region10: #{tpu_custom_call.1} parent=1 // pred_check
      _
    $region11: #{tpu_custom_call.1} parent=1 // pred_check_branch
      %43 = sbr.rel (0) target = $region13
    $region12: #{tpu_custom_call.1} parent=1 // pred_region
      %s45 = ssub.s32 2048, 2048
      %46 = vsyncadd [#allocation9], %s45
      %s47 = sshll.u32 [#allocation10], 4
      %s48 = int_to_ptr.vmem [resolvable:$true] %s47
      %53 = dma.hbm_to_vmem [thread:$0]  %s2, 2048, %s48, [#allocation9], 128, 128, 8
    $region13: #{tpu_custom_call.1} parent=1 // pred_fallthru
      _
    // Predicated region
    $region14: #{tpu_custom_call.1} parent=1 // pred_check
      _
    $region15: #{tpu_custom_call.1} parent=1 // pred_check_branch
      %55 = sbr.rel (0) target = $region17
    $region16: #{tpu_custom_call.1} parent=1 // pred_region
      %s57 = ssub.s32 2048, 2048
      %58 = vsyncadd [#allocation12], %s57
      %s59 = sshll.u32 [#allocation11], 4
      %s60 = int_to_ptr.vmem [resolvable:$true] %s59
      %65 = dma.hbm_to_vmem [thread:$0]  %s3, 2048, %s60, [#allocation12], 128, 128, 8
    $region17: #{tpu_custom_call.1} parent=1 // pred_fallthru
      _
    // Predicated region
    $region18: #{tpu_custom_call.1} parent=1 // pred_check
      _
    $region19: #{tpu_custom_call.1} parent=1 // pred_check_branch
      %67 = sbr.rel (0) target = $region21
    $region20: #{tpu_custom_call.1} parent=1 // pred_region
      _
    $region21: #{tpu_custom_call.1} parent=1 // pred_fallthru
      _
    // Predicated region
    $region22: #{tpu_custom_call.1} parent=1 // pred_check
      _
    $region23: #{tpu_custom_call.1} parent=1 // pred_check_branch
      %69 = sbr.rel (0) target = $region25
    $region24: #{tpu_custom_call.1} parent=1 // pred_region
      _
    $region25: #{tpu_custom_call.1} parent=1 // pred_fallthru
      _
    // Predicated region
    $region26: #{tpu_custom_call.1} parent=1 // pred_check
      _
    $region27: #{tpu_custom_call.1} parent=1 // pred_check_branch
      %71 = sbr.rel (0) target = $region29
    $region28: #{tpu_custom_call.1} parent=1 // pred_region
      %72 = dma.done [#allocation6], 1024
    $region29: #{tpu_custom_call.1} parent=1 // pred_fallthru
      _
    // Predicated region
    $region30: #{tpu_custom_call.1} parent=1 // pred_check
      _
    $region31: #{tpu_custom_call.1} parent=1 // pred_check_branch
      %74 = sbr.rel (0) target = $region33
    $region32: #{tpu_custom_call.1} parent=1 // pred_region
      %75 = dma.done [#allocation9], 512
    $region33: #{tpu_custom_call.1} parent=1 // pred_fallthru
      _
    // Predicated region
    $region34: #{tpu_custom_call.1} parent=1 // pred_check
      _
    $region35: #{tpu_custom_call.1} parent=1 // pred_check_branch
      %77 = sbr.rel (0) target = $region37
    $region36: #{tpu_custom_call.1} parent=1 // pred_region
      %78 = dma.done [#allocation9], 2048
    $region37: #{tpu_custom_call.1} parent=1 // pred_fallthru
      _
    // Predicated region
    $region38: #{tpu_custom_call.1} parent=1 // pred_check
      _
    $region39: #{tpu_custom_call.1} parent=1 // pred_check_branch
      %80 = sbr.rel (0) target = $region41
    $region40: #{tpu_custom_call.1} parent=1 // pred_region
      %81 = dma.done [#allocation12], 2048
    $region41: #{tpu_custom_call.1} parent=1 // pred_fallthru
      _
    %p82 = scmp.eq.s32.totalorder 0, 0
    // Predicated region
    $region42: #{tpu_custom_call.1} parent=1 // pred_check
      %p83 = pneg %p82
    $region43: #{tpu_custom_call.1} parent=1 // pred_check_branch
      %85 = sbr.rel (%p83) target = $region45
    $region44: #{tpu_custom_call.1} parent=1 // pred_region
      %v86 = vld [vmem:[%s5] sm:$0xff]
      %87 = vst [vmem:[#allocation14] sm:$0xff] %v86
    $region45: #{tpu_custom_call.1} parent=1 // pred_fallthru
      _
    %v88 = vld [vmem:[#allocation5] sm:$0xff]
    %v89 = vld [vmem:[#allocation5 + $0x8] sm:$0xff]
    %v90 = vld [vmem:[#allocation5 + $0x10] sm:$0xff]
    %v91 = vld [vmem:[#allocation5 + $0x18] sm:$0xff]
    %v92 = vld [vmem:[#allocation5 + $0x20] sm:$0xff]
    %v93 = vld [vmem:[#allocation5 + $0x28] sm:$0xff]
    %v94 = vld [vmem:[#allocation5 + $0x30] sm:$0xff]
    %v95 = vld [vmem:[#allocation5 + $0x38] sm:$0xff]
    %v96 = vld [vmem:[#allocation8] sm:$0xff]
    %v97 = vld [vmem:[#allocation8 + $0x8] sm:$0xff]
    %v98 = vld [vmem:[#allocation8 + $0x10] sm:$0xff]
    %v99 = vld [vmem:[#allocation8 + $0x18] sm:$0xff]
    %v100 = vld [vmem:[%s4] sm:$0x3]
    %v102 = vlaneseq
    %v103 = vshrl.u32 %v102, 7
    %v104 = vsub.s32 0, %v103
    %v105 = vrot.slane %v100, %v104
    %v106 = vlaneseq
    %v107 = vshrl.u32 %v106, 7
    %v108 = vsub.s32 1, %v107
    %v109 = vrot.slane %v100, %v108
    %vm112 = vcmask 130048
    %v114 = vsel %vm112, %v88, 0
    %v117 = vsel %vm112, %v89, 0
    %v120 = vsel %vm112, %v90, 0
    %v123 = vsel %vm112, %v91, 0
    %v126 = vsel %vm112, %v92, 0
    %v129 = vsel %vm112, %v93, 0
    %v132 = vsel %vm112, %v94, 0
    %v135 = vsel %vm112, %v95, 0
    %137 = vmatprep.subr.mxu0 %v97
    %138 = vmatpush1.msra.mxu0 %v96
    %139 = vmatprep.subr.mxu0 %v99
    %140 = vmatpush1.msra.mxu0 %v98
    %141 = vmatprep.subr.mxu0 0.0
    %142 = vmatpush1.msra.mxu0 0.0
    %143 = vmatprep.subr.mxu0 0.0
    %144 = vmatpush1.msra.mxu0 0.0
    %145 = vmatprep.subr.mxu0 0.0
    %146 = vmatpush1.msra.mxu0 0.0
    %147 = vmatprep.subr.mxu0 0.0
    %148 = vmatpush1.msra.mxu0 0.0
    %149 = vmatprep.subr.mxu0 0.0
    %150 = vmatpush1.msra.mxu0 0.0
    %151 = vmatprep.subr.mxu0 0.0
    %152 = vmatpush1.msra.mxu0 0.0
    %153 = vmatprep.subr.mxu0 0.0
    %154 = vmatpush1.msra.mxu0 0.0
    %155 = vmatprep.subr.mxu0 0.0
    %156 = vmatpush1.msra.mxu0 0.0
    %157 = vmatprep.subr.mxu0 0.0
    %158 = vmatpush1.msra.mxu0 0.0
    %159 = vmatprep.subr.mxu0 0.0
    %160 = vmatpush1.msra.mxu0 0.0
    %161 = vmatprep.subr.mxu0 0.0
    %162 = vmatpush1.msra.mxu0 0.0
    %163 = vmatprep.subr.mxu0 0.0
    %164 = vmatpush1.msra.mxu0 0.0
    %165 = vmatprep.subr.mxu0 0.0
    %166 = vmatpush1.msra.mxu0 0.0
    %167 = vmatprep.subr.mxu0 0.0
    %168 = vmatpush1.msra.mxu0 0.0
    %169 = vmatprep.subr.mxu0 0.0
    %170 = vmatpush1.msra.mxu0 0.0
    %171 = vmatprep.subr.mxu0 0.0
    %172 = vmatpush1.msra.mxu0 0.0
    %173 = vmatprep.subr.mxu0 0.0
    %174 = vmatpush1.msra.mxu0 0.0
    %175 = vmatprep.subr.mxu0 0.0
    %176 = vmatpush1.msra.mxu0 0.0
    %177 = vmatprep.subr.mxu0 0.0
    %178 = vmatpush1.msra.mxu0 0.0
    %179 = vmatprep.subr.mxu0 0.0
    %180 = vmatpush1.msra.mxu0 0.0
    %181 = vmatprep.subr.mxu0 0.0
    %182 = vmatpush1.msra.mxu0 0.0
    %183 = vmatprep.subr.mxu0 0.0
    %184 = vmatpush1.msra.mxu0 0.0
    %185 = vmatprep.subr.mxu0 0.0
    %186 = vmatpush1.msra.mxu0 0.0
    %187 = vmatprep.subr.mxu0 0.0
    %188 = vmatpush1.msra.mxu0 0.0
    %189 = vmatprep.subr.mxu0 0.0
    %190 = vmatpush1.msra.mxu0 0.0
    %191 = vmatprep.subr.mxu0 0.0
    %192 = vmatpush1.msra.mxu0 0.0
    %193 = vmatprep.subr.mxu0 0.0
    %194 = vmatpush1.msra.mxu0 0.0
    %195 = vmatprep.subr.mxu0 0.0
    %196 = vmatpush1.msra.mxu0 0.0
    %197 = vmatprep.subr.mxu0 0.0
    %198 = vmatpush1.msra.mxu0 0.0
    %199 = vmatprep.subr.mxu0 0.0
    %200 = vmatpush1.msra.mxu0 0.0
    %201 = vmatprep.mubr.f32.mxu0 0.0
    %202 = vmatmul.mubr.f32.gmra.mrb[0].mxu0 %v114
    %v203 = vpop.f32.mrb[0].mxu0
    %v204 = vadd.f32 %v105, %v203
    %v205 = vpop.f32.mrb[0].mxu0
    %v206 = vadd.f32 %v109, %v205
    %207 = vmatprep.mubr.f32.mxu0 0.0
    %208 = vmatmul.mubr.f32.gmra.mrb[0].mxu0 %v117
    %v209 = vpop.f32.mrb[0].mxu0
    %v210 = vadd.f32 %v105, %v209
    %v211 = vpop.f32.mrb[0].mxu0
    %v212 = vadd.f32 %v109, %v211
    %213 = vmatprep.mubr.f32.mxu0 0.0
    %214 = vmatmul.mubr.f32.gmra.mrb[0].mxu0 %v120
    %v215 = vpop.f32.mrb[0].mxu0
    %v216 = vadd.f32 %v105, %v215
    %v217 = vpop.f32.mrb[0].mxu0
    %v218 = vadd.f32 %v109, %v217
    %219 = vmatprep.mubr.f32.mxu0 0.0
    %220 = vmatmul.mubr.f32.gmra.mrb[0].mxu0 %v123
    %v221 = vpop.f32.mrb[0].mxu0
    %v222 = vadd.f32 %v105, %v221
    %v223 = vpop.f32.mrb[0].mxu0
    %v224 = vadd.f32 %v109, %v223
    %225 = vmatprep.mubr.f32.mxu0 0.0
    %226 = vmatmul.mubr.f32.gmra.mrb[0].mxu0 %v126
    %v227 = vpop.f32.mrb[0].mxu0
    %v228 = vadd.f32 %v105, %v227
    %v229 = vpop.f32.mrb[0].mxu0
    %v230 = vadd.f32 %v109, %v229
    %231 = vmatprep.mubr.f32.mxu0 0.0
    %232 = vmatmul.mubr.f32.gmra.mrb[0].mxu0 %v129
    %v233 = vpop.f32.mrb[0].mxu0
    %v234 = vadd.f32 %v105, %v233
    %v235 = vpop.f32.mrb[0].mxu0
    %v236 = vadd.f32 %v109, %v235
    %237 = vmatprep.mubr.f32.mxu0 0.0
    %238 = vmatmul.mubr.f32.gmra.mrb[0].mxu0 %v132
    %v239 = vpop.f32.mrb[0].mxu0
    %v240 = vadd.f32 %v105, %v239
    %v241 = vpop.f32.mrb[0].mxu0
    %v242 = vadd.f32 %v109, %v241
    %243 = vmatprep.mubr.f32.mxu0 0.0
    %244 = vmatmul.mubr.f32.gmra.mrb[0].mxu0 %v135
    %v245 = vpop.f32.mrb[0].mxu0
    %v246 = vadd.f32 %v105, %v245
    %v247 = vpop.f32.mrb[0].mxu0
    %v248 = vadd.f32 %v109, %v247
    %249 = vdwg.mxu0
    %250 = vst [vmem:[#allocation2] sm:$0xff] %v204
    %251 = vst [vmem:[#allocation2 + $0x8] sm:$0xff] %v210
    %252 = vst [vmem:[#allocation2 + $0x10] sm:$0xff] %v216
    %253 = vst [vmem:[#allocation2 + $0x18] sm:$0xff] %v222
    %254 = vst [vmem:[#allocation2 + $0x20] sm:$0xff] %v228
    %255 = vst [vmem:[#allocation2 + $0x28] sm:$0xff] %v234
    %256 = vst [vmem:[#allocation2 + $0x30] sm:$0xff] %v240
    %257 = vst [vmem:[#allocation2 + $0x38] sm:$0xff] %v246
    %258 = vst [vmem:[#allocation3] sm:$0xff] %v206
    %259 = vst [vmem:[#allocation3 + $0x8] sm:$0xff] %v212
    %260 = vst [vmem:[#allocation3 + $0x10] sm:$0xff] %v218
    %261 = vst [vmem:[#allocation3 + $0x18] sm:$0xff] %v224
    %262 = vst [vmem:[#allocation3 + $0x20] sm:$0xff] %v230
    %263 = vst [vmem:[#allocation3 + $0x28] sm:$0xff] %v236
    %264 = vst [vmem:[#allocation3 + $0x30] sm:$0xff] %v242
    %265 = vst [vmem:[#allocation3 + $0x38] sm:$0xff] %v248
    %v266 = vld [vmem:[#allocation14] sm:$0xff]
    %267 = vst [vmem:[#allocation4] sm:$0xff] %v266
    %v268 = vld [vmem:[#allocation2] sm:$0xff]
    %v269 = vld [vmem:[#allocation10] sm:$0xff]
    %v270 = vld [vmem:[#allocation10 + $0x8] sm:$0xff]
    %v271 = vld [vmem:[#allocation10 + $0x10] sm:$0xff]
    %v272 = vld [vmem:[#allocation10 + $0x18] sm:$0xff]
    %v273 = vld [vmem:[#allocation10 + $0x20] sm:$0xff]
    %v274 = vld [vmem:[#allocation10 + $0x28] sm:$0xff]
    %v275 = vld [vmem:[#allocation10 + $0x30] sm:$0xff]
    %v276 = vld [vmem:[#allocation10 + $0x38] sm:$0xff]
    %v277 = vld [vmem:[#allocation10 + $0x40] sm:$0xff]
    %v278 = vld [vmem:[#allocation10 + $0x48] sm:$0xff]
    %v279 = vld [vmem:[#allocation10 + $0x50] sm:$0xff]
    %v280 = vld [vmem:[#allocation10 + $0x58] sm:$0xff]
    %v281 = vld [vmem:[#allocation10 + $0x60] sm:$0xff]
    %v282 = vld [vmem:[#allocation10 + $0x68] sm:$0xff]
    %v283 = vld [vmem:[#allocation10 + $0x70] sm:$0xff]
    %v284 = vld [vmem:[#allocation10 + $0x78] sm:$0xff]
    %285 = vmatprep.subr.mxu0 0.0
    %286 = vmatpush1.msra.mxu0 %v269
    %287 = vmatprep.subr.mxu0 0.0
    %288 = vmatpush1.msra.mxu0 %v270
    %289 = vmatprep.subr.mxu0 0.0
    %290 = vmatpush1.msra.mxu0 %v271
    %291 = vmatprep.subr.mxu0 0.0
    %292 = vmatpush1.msra.mxu0 %v272
    %293 = vmatprep.subr.mxu0 0.0
    %294 = vmatpush1.msra.mxu0 %v273
    %295 = vmatprep.subr.mxu0 0.0
    %296 = vmatpush1.msra.mxu0 %v274
    %297 = vmatprep.subr.mxu0 0.0
    %298 = vmatpush1.msra.mxu0 %v275
    %299 = vmatprep.subr.mxu0 0.0
    %300 = vmatpush1.msra.mxu0 %v276
    %301 = vmatprep.subr.mxu0 0.0
    %302 = vmatpush1.msra.mxu0 %v277
    %303 = vmatprep.subr.mxu0 0.0
    %304 = vmatpush1.msra.mxu0 %v278
    %305 = vmatprep.subr.mxu0 0.0
    %306 = vmatpush1.msra.mxu0 %v279
    %307 = vmatprep.subr.mxu0 0.0
    %308 = vmatpush1.msra.mxu0 %v280
    %309 = vmatprep.subr.mxu0 0.0
    %310 = vmatpush1.msra.mxu0 %v281
    %311 = vmatprep.subr.mxu0 0.0
    %312 = vmatpush1.msra.mxu0 %v282
    %313 = vmatprep.subr.mxu0 0.0
    %314 = vmatpush1.msra.mxu0 %v283
    %315 = vmatprep.subr.mxu0 0.0
    %316 = vmatpush1.msra.mxu0 %v284
    %317 = vmatprep.subr.mxu0 0.0
    %318 = vmatpush1.msra.mxu0 0.0
    %319 = vmatprep.subr.mxu0 0.0
    %320 = vmatpush1.msra.mxu0 0.0
    %321 = vmatprep.subr.mxu0 0.0
    %322 = vmatpush1.msra.mxu0 0.0
    %323 = vmatprep.subr.mxu0 0.0
    %324 = vmatpush1.msra.mxu0 0.0
    %325 = vmatprep.subr.mxu0 0.0
    %326 = vmatpush1.msra.mxu0 0.0
    %327 = vmatprep.subr.mxu0 0.0
    %328 = vmatpush1.msra.mxu0 0.0
    %329 = vmatprep.subr.mxu0 0.0
    %330 = vmatpush1.msra.mxu0 0.0
    %331 = vmatprep.subr.mxu0 0.0
    %332 = vmatpush1.msra.mxu0 0.0
    %333 = vmatprep.subr.mxu0 0.0
    %334 = vmatpush1.msra.mxu0 0.0
    %335 = vmatprep.subr.mxu0 0.0
    %336 = vmatpush1.msra.mxu0 0.0
    %337 = vmatprep.subr.mxu0 0.0
    %338 = vmatpush1.msra.mxu0 0.0
    %339 = vmatprep.subr.mxu0 0.0
    %340 = vmatpush1.msra.mxu0 0.0
    %341 = vmatprep.subr.mxu0 0.0
    %342 = vmatpush1.msra.mxu0 0.0
    %343 = vmatprep.subr.mxu0 0.0
    %344 = vmatpush1.msra.mxu0 0.0
    %345 = vmatprep.subr.mxu0 0.0
    %346 = vmatpush1.msra.mxu0 0.0
    %347 = vmatprep.subr.mxu0 0.0
    %348 = vmatpush1.msra.mxu0 0.0
    %349 = vmatprep.mubr.f32.mxu0 0.0
    %350 = vmatmul.mubr.f32.gmra.mrb[0].mxu0 %v266
    %v351 = vpop.f32.mrb[0].mxu0
    %v352 = vadd.f32 0.0, %v351
    %v353 = vpop.f32.mrb[0].mxu0
    %354 = vdwg.mxu0
    %v355 = vadd.f32 %v268, %v352
    %s356 = scalar_lea.vmem [#allocation4], 8
    %357 = vst [vmem:[%s356] sm:$0xff] %v355
    %s358 = scalar_lea.vmem [#allocation2], 8
    %v359 = vld [vmem:[%s358] sm:$0xff]
    %v360 = vld [vmem:[#allocation10] sm:$0xff]
    %v361 = vld [vmem:[#allocation10 + $0x8] sm:$0xff]
    %v362 = vld [vmem:[#allocation10 + $0x10] sm:$0xff]
    %v363 = vld [vmem:[#allocation10 + $0x18] sm:$0xff]
    %v364 = vld [vmem:[#allocation10 + $0x20] sm:$0xff]
    %v365 = vld [vmem:[#allocation10 + $0x28] sm:$0xff]
    %v366 = vld [vmem:[#allocation10 + $0x30] sm:$0xff]
    %v367 = vld [vmem:[#allocation10 + $0x38] sm:$0xff]
    %v368 = vld [vmem:[#allocation10 + $0x40] sm:$0xff]
    %v369 = vld [vmem:[#allocation10 + $0x48] sm:$0xff]
    %v370 = vld [vmem:[#allocation10 + $0x50] sm:$0xff]
    %v371 = vld [vmem:[#allocation10 + $0x58] sm:$0xff]
    %v372 = vld [vmem:[#allocation10 + $0x60] sm:$0xff]
    %v373 = vld [vmem:[#allocation10 + $0x68] sm:$0xff]
    %v374 = vld [vmem:[#allocation10 + $0x70] sm:$0xff]
    %v375 = vld [vmem:[#allocation10 + $0x78] sm:$0xff]
    %376 = vmatprep.subr.mxu0 0.0
    %377 = vmatpush1.msra.mxu0 %v360
    %378 = vmatprep.subr.mxu0 0.0
    %379 = vmatpush1.msra.mxu0 %v361
    %380 = vmatprep.subr.mxu0 0.0
    %381 = vmatpush1.msra.mxu0 %v362
    %382 = vmatprep.subr.mxu0 0.0
    %383 = vmatpush1.msra.mxu0 %v363
    %384 = vmatprep.subr.mxu0 0.0
    %385 = vmatpush1.msra.mxu0 %v364
    %386 = vmatprep.subr.mxu0 0.0
    %387 = vmatpush1.msra.mxu0 %v365
    %388 = vmatprep.subr.mxu0 0.0
    %389 = vmatpush1.msra.mxu0 %v366
    %390 = vmatprep.subr.mxu0 0.0
    %391 = vmatpush1.msra.mxu0 %v367
    %392 = vmatprep.subr.mxu0 0.0
    %393 = vmatpush1.msra.mxu0 %v368
    %394 = vmatprep.subr.mxu0 0.0
    %395 = vmatpush1.msra.mxu0 %v369
    %396 = vmatprep.subr.mxu0 0.0
    %397 = vmatpush1.msra.mxu0 %v370
    %398 = vmatprep.subr.mxu0 0.0
    %399 = vmatpush1.msra.mxu0 %v371
    %400 = vmatprep.subr.mxu0 0.0
    %401 = vmatpush1.msra.mxu0 %v372
    %402 = vmatprep.subr.mxu0 0.0
    %403 = vmatpush1.msra.mxu0 %v373
    %404 = vmatprep.subr.mxu0 0.0
    %405 = vmatpush1.msra.mxu0 %v374
    %406 = vmatprep.subr.mxu0 0.0
    %407 = vmatpush1.msra.mxu0 %v375
    %408 = vmatprep.subr.mxu0 0.0
    %409 = vmatpush1.msra.mxu0 0.0
    %410 = vmatprep.subr.mxu0 0.0
    %411 = vmatpush1.msra.mxu0 0.0
    %412 = vmatprep.subr.mxu0 0.0
    %413 = vmatpush1.msra.mxu0 0.0
    %414 = vmatprep.subr.mxu0 0.0
    %415 = vmatpush1.msra.mxu0 0.0
    %416 = vmatprep.subr.mxu0 0.0
    %417 = vmatpush1.msra.mxu0 0.0
    %418 = vmatprep.subr.mxu0 0.0
    %419 = vmatpush1.msra.mxu0 0.0
    %420 = vmatprep.subr.mxu0 0.0
    %421 = vmatpush1.msra.mxu0 0.0
    %422 = vmatprep.subr.mxu0 0.0
    %423 = vmatpush1.msra.mxu0 0.0
    %424 = vmatprep.subr.mxu0 0.0
    %425 = vmatpush1.msra.mxu0 0.0
    %426 = vmatprep.subr.mxu0 0.0
    %427 = vmatpush1.msra.mxu0 0.0
    %428 = vmatprep.subr.mxu0 0.0
    %429 = vmatpush1.msra.mxu0 0.0
    %430 = vmatprep.subr.mxu0 0.0
    %431 = vmatpush1.msra.mxu0 0.0
    %432 = vmatprep.subr.mxu0 0.0
    %433 = vmatpush1.msra.mxu0 0.0
    %434 = vmatprep.subr.mxu0 0.0
    %435 = vmatpush1.msra.mxu0 0.0
    %436 = vmatprep.subr.mxu0 0.0
    %437 = vmatpush1.msra.mxu0 0.0
    %438 = vmatprep.subr.mxu0 0.0
    %439 = vmatpush1.msra.mxu0 0.0
    %440 = vmatprep.mubr.f32.mxu0 0.0
    %441 = vmatmul.mubr.f32.gmra.mrb[0].mxu0 %v355
    %v442 = vpop.f32.mrb[0].mxu0
    %v443 = vadd.f32 0.0, %v442
    %v444 = vpop.f32.mrb[0].mxu0
    %445 = vdwg.mxu0
    %v446 = vadd.f32 %v359, %v443
    %s447 = scalar_lea.vmem [#allocation4], 16
    %448 = vst [vmem:[%s447] sm:$0xff] %v446
    %s449 = scalar_lea.vmem [#allocation2], 16
    %v450 = vld [vmem:[%s449] sm:$0xff]
    %v451 = vld [vmem:[#allocation10] sm:$0xff]
    %v452 = vld [vmem:[#allocation10 + $0x8] sm:$0xff]
    %v453 = vld [vmem:[#allocation10 + $0x10] sm:$0xff]
    %v454 = vld [vmem:[#allocation10 + $0x18] sm:$0xff]
    %v455 = vld [vmem:[#allocation10 + $0x20] sm:$0xff]
    %v456 = vld [vmem:[#allocation10 + $0x28] sm:$0xff]
    %v457 = vld [vmem:[#allocation10 + $0x30] sm:$0xff]
    %v458 = vld [vmem:[#allocation10 + $0x38] sm:$0xff]
    %v459 = vld [vmem:[#allocation10 + $0x40] sm:$0xff]
    %v460 = vld [vmem:[#allocation10 + $0x48] sm:$0xff]
    %v461 = vld [vmem:[#allocation10 + $0x50] sm:$0xff]
    %v462 = vld [vmem:[#allocation10 + $0x58] sm:$0xff]
    %v463 = vld [vmem:[#allocation10 + $0x60] sm:$0xff]
    %v464 = vld [vmem:[#allocation10 + $0x68] sm:$0xff]
    %v465 = vld [vmem:[#allocation10 + $0x70] sm:$0xff]
    %v466 = vld [vmem:[#allocation10 + $0x78] sm:$0xff]
    %467 = vmatprep.subr.mxu0 0.0
    %468 = vmatpush1.msra.mxu0 %v451
    %469 = vmatprep.subr.mxu0 0.0
    %470 = vmatpush1.msra.mxu0 %v452
    %471 = vmatprep.subr.mxu0 0.0
    %472 = vmatpush1.msra.mxu0 %v453
    %473 = vmatprep.subr.mxu0 0.0
    %474 = vmatpush1.msra.mxu0 %v454
    %475 = vmatprep.subr.mxu0 0.0
    %476 = vmatpush1.msra.mxu0 %v455
    %477 = vmatprep.subr.mxu0 0.0
    %478 = vmatpush1.msra.mxu0 %v456
    %479 = vmatprep.subr.mxu0 0.0
    %480 = vmatpush1.msra.mxu0 %v457
    %481 = vmatprep.subr.mxu0 0.0
    %482 = vmatpush1.msra.mxu0 %v458
    %483 = vmatprep.subr.mxu0 0.0
    %484 = vmatpush1.msra.mxu0 %v459
    %485 = vmatprep.subr.mxu0 0.0
    %486 = vmatpush1.msra.mxu0 %v460
    %487 = vmatprep.subr.mxu0 0.0
    %488 = vmatpush1.msra.mxu0 %v461
    %489 = vmatprep.subr.mxu0 0.0
    %490 = vmatpush1.msra.mxu0 %v462
    %491 = vmatprep.subr.mxu0 0.0
    %492 = vmatpush1.msra.mxu0 %v463
    %493 = vmatprep.subr.mxu0 0.0
    %494 = vmatpush1.msra.mxu0 %v464
    %495 = vmatprep.subr.mxu0 0.0
    %496 = vmatpush1.msra.mxu0 %v465
    %497 = vmatprep.subr.mxu0 0.0
    %498 = vmatpush1.msra.mxu0 %v466
    %499 = vmatprep.subr.mxu0 0.0
    %500 = vmatpush1.msra.mxu0 0.0
    %501 = vmatprep.subr.mxu0 0.0
    %502 = vmatpush1.msra.mxu0 0.0
    %503 = vmatprep.subr.mxu0 0.0
    %504 = vmatpush1.msra.mxu0 0.0
    %505 = vmatprep.subr.mxu0 0.0
    %506 = vmatpush1.msra.mxu0 0.0
    %507 = vmatprep.subr.mxu0 0.0
    %508 = vmatpush1.msra.mxu0 0.0
    %509 = vmatprep.subr.mxu0 0.0
    %510 = vmatpush1.msra.mxu0 0.0
    %511 = vmatprep.subr.mxu0 0.0
    %512 = vmatpush1.msra.mxu0 0.0
    %513 = vmatprep.subr.mxu0 0.0
    %514 = vmatpush1.msra.mxu0 0.0
    %515 = vmatprep.subr.mxu0 0.0
    %516 = vmatpush1.msra.mxu0 0.0
    %517 = vmatprep.subr.mxu0 0.0
    %518 = vmatpush1.msra.mxu0 0.0
    %519 = vmatprep.subr.mxu0 0.0
    %520 = vmatpush1.msra.mxu0 0.0
    %521 = vmatprep.subr.mxu0 0.0
    %522 = vmatpush1.msra.mxu0 0.0
    %523 = vmatprep.subr.mxu0 0.0
    %524 = vmatpush1.msra.mxu0 0.0
    %525 = vmatprep.subr.mxu0 0.0
    %526 = vmatpush1.msra.mxu0 0.0
    %527 = vmatprep.subr.mxu0 0.0
    %528 = vmatpush1.msra.mxu0 0.0
    %529 = vmatprep.subr.mxu0 0.0
    %530 = vmatpush1.msra.mxu0 0.0
    %531 = vmatprep.mubr.f32.mxu0 0.0
    %532 = vmatmul.mubr.f32.gmra.mrb[0].mxu0 %v446
    %v533 = vpop.f32.mrb[0].mxu0
    %v534 = vadd.f32 0.0, %v533
    %v535 = vpop.f32.mrb[0].mxu0
    %536 = vdwg.mxu0
    %v537 = vadd.f32 %v450, %v534
    %s538 = scalar_lea.vmem [#allocation4], 24
    %539 = vst [vmem:[%s538] sm:$0xff] %v537
    %s540 = scalar_lea.vmem [#allocation2], 24
    %v541 = vld [vmem:[%s540] sm:$0xff]
    %v542 = vld [vmem:[#allocation10] sm:$0xff]
    %v543 = vld [vmem:[#allocation10 + $0x8] sm:$0xff]
    %v544 = vld [vmem:[#allocation10 + $0x10] sm:$0xff]
    %v545 = vld [vmem:[#allocation10 + $0x18] sm:$0xff]
    %v546 = vld [vmem:[#allocation10 + $0x20] sm:$0xff]
    %v547 = vld [vmem:[#allocation10 + $0x28] sm:$0xff]
    %v548 = vld [vmem:[#allocation10 + $0x30] sm:$0xff]
    %v549 = vld [vmem:[#allocation10 + $0x38] sm:$0xff]
    %v550 = vld [vmem:[#allocation10 + $0x40] sm:$0xff]
    %v551 = vld [vmem:[#allocation10 + $0x48] sm:$0xff]
    %v552 = vld [vmem:[#allocation10 + $0x50] sm:$0xff]
    %v553 = vld [vmem:[#allocation10 + $0x58] sm:$0xff]
    %v554 = vld [vmem:[#allocation10 + $0x60] sm:$0xff]
    %v555 = vld [vmem:[#allocation10 + $0x68] sm:$0xff]
    %v556 = vld [vmem:[#allocation10 + $0x70] sm:$0xff]
    %v557 = vld [vmem:[#allocation10 + $0x78] sm:$0xff]
    %558 = vmatprep.subr.mxu0 0.0
    %559 = vmatpush1.msra.mxu0 %v542
    %560 = vmatprep.subr.mxu0 0.0
    %561 = vmatpush1.msra.mxu0 %v543
    %562 = vmatprep.subr.mxu0 0.0
    %563 = vmatpush1.msra.mxu0 %v544
    %564 = vmatprep.subr.mxu0 0.0
    %565 = vmatpush1.msra.mxu0 %v545
    %566 = vmatprep.subr.mxu0 0.0
    %567 = vmatpush1.msra.mxu0 %v546
    %568 = vmatprep.subr.mxu0 0.0
    %569 = vmatpush1.msra.mxu0 %v547
    %570 = vmatprep.subr.mxu0 0.0
    %571 = vmatpush1.msra.mxu0 %v548
    %572 = vmatprep.subr.mxu0 0.0
    %573 = vmatpush1.msra.mxu0 %v549
    %574 = vmatprep.subr.mxu0 0.0
    %575 = vmatpush1.msra.mxu0 %v550
    %576 = vmatprep.subr.mxu0 0.0
    %577 = vmatpush1.msra.mxu0 %v551
    %578 = vmatprep.subr.mxu0 0.0
    %579 = vmatpush1.msra.mxu0 %v552
    %580 = vmatprep.subr.mxu0 0.0
    %581 = vmatpush1.msra.mxu0 %v553
    %582 = vmatprep.subr.mxu0 0.0
    %583 = vmatpush1.msra.mxu0 %v554
    %584 = vmatprep.subr.mxu0 0.0
    %585 = vmatpush1.msra.mxu0 %v555
    %586 = vmatprep.subr.mxu0 0.0
    %587 = vmatpush1.msra.mxu0 %v556
    %588 = vmatprep.subr.mxu0 0.0
    %589 = vmatpush1.msra.mxu0 %v557
    %590 = vmatprep.subr.mxu0 0.0
    %591 = vmatpush1.msra.mxu0 0.0
    %592 = vmatprep.subr.mxu0 0.0
    %593 = vmatpush1.msra.mxu0 0.0
    %594 = vmatprep.subr.mxu0 0.0
    %595 = vmatpush1.msra.mxu0 0.0
    %596 = vmatprep.subr.mxu0 0.0
    %597 = vmatpush1.msra.mxu0 0.0
    %598 = vmatprep.subr.mxu0 0.0
    %599 = vmatpush1.msra.mxu0 0.0
    %600 = vmatprep.subr.mxu0 0.0
    %601 = vmatpush1.msra.mxu0 0.0
    %602 = vmatprep.subr.mxu0 0.0
    %603 = vmatpush1.msra.mxu0 0.0
    %604 = vmatprep.subr.mxu0 0.0
    %605 = vmatpush1.msra.mxu0 0.0
    %606 = vmatprep.subr.mxu0 0.0
    %607 = vmatpush1.msra.mxu0 0.0
    %608 = vmatprep.subr.mxu0 0.0
    %609 = vmatpush1.msra.mxu0 0.0
    %610 = vmatprep.subr.mxu0 0.0
    %611 = vmatpush1.msra.mxu0 0.0
    %612 = vmatprep.subr.mxu0 0.0
    %613 = vmatpush1.msra.mxu0 0.0
    %614 = vmatprep.subr.mxu0 0.0
    %615 = vmatpush1.msra.mxu0 0.0
    %616 = vmatprep.subr.mxu0 0.0
    %617 = vmatpush1.msra.mxu0 0.0
    %618 = vmatprep.subr.mxu0 0.0
    %619 = vmatpush1.msra.mxu0 0.0
    %620 = vmatprep.subr.mxu0 0.0
    %621 = vmatpush1.msra.mxu0 0.0
    %622 = vmatprep.mubr.f32.mxu0 0.0
    %623 = vmatmul.mubr.f32.gmra.mrb[0].mxu0 %v537
    %v624 = vpop.f32.mrb[0].mxu0
    %v625 = vadd.f32 0.0, %v624
    %v626 = vpop.f32.mrb[0].mxu0
    %627 = vdwg.mxu0
    %v628 = vadd.f32 %v541, %v625
    %s629 = scalar_lea.vmem [#allocation4], 32
    %630 = vst [vmem:[%s629] sm:$0xff] %v628
    %s631 = scalar_lea.vmem [#allocation2], 32
    %v632 = vld [vmem:[%s631] sm:$0xff]
    %v633 = vld [vmem:[#allocation10] sm:$0xff]
    %v634 = vld [vmem:[#allocation10 + $0x8] sm:$0xff]
    %v635 = vld [vmem:[#allocation10 + $0x10] sm:$0xff]
    %v636 = vld [vmem:[#allocation10 + $0x18] sm:$0xff]
    %v637 = vld [vmem:[#allocation10 + $0x20] sm:$0xff]
    %v638 = vld [vmem:[#allocation10 + $0x28] sm:$0xff]
    %v639 = vld [vmem:[#allocation10 + $0x30] sm:$0xff]
    %v640 = vld [vmem:[#allocation10 + $0x38] sm:$0xff]
    %v641 = vld [vmem:[#allocation10 + $0x40] sm:$0xff]
    %v642 = vld [vmem:[#allocation10 + $0x48] sm:$0xff]
    %v643 = vld [vmem:[#allocation10 + $0x50] sm:$0xff]
    %v644 = vld [vmem:[#allocation10 + $0x58] sm:$0xff]
    %v645 = vld [vmem:[#allocation10 + $0x60] sm:$0xff]
    %v646 = vld [vmem:[#allocation10 + $0x68] sm:$0xff]
    %v647 = vld [vmem:[#allocation10 + $0x70] sm:$0xff]
    %v648 = vld [vmem:[#allocation10 + $0x78] sm:$0xff]
    %649 = vmatprep.subr.mxu0 0.0
    %650 = vmatpush1.msra.mxu0 %v633
    %651 = vmatprep.subr.mxu0 0.0
    %652 = vmatpush1.msra.mxu0 %v634
    %653 = vmatprep.subr.mxu0 0.0
    %654 = vmatpush1.msra.mxu0 %v635
    %655 = vmatprep.subr.mxu0 0.0
    %656 = vmatpush1.msra.mxu0 %v636
    %657 = vmatprep.subr.mxu0 0.0
    %658 = vmatpush1.msra.mxu0 %v637
    %659 = vmatprep.subr.mxu0 0.0
    %660 = vmatpush1.msra.mxu0 %v638
    %661 = vmatprep.subr.mxu0 0.0
    %662 = vmatpush1.msra.mxu0 %v639
    %663 = vmatprep.subr.mxu0 0.0
    %664 = vmatpush1.msra.mxu0 %v640
    %665 = vmatprep.subr.mxu0 0.0
    %666 = vmatpush1.msra.mxu0 %v641
    %667 = vmatprep.subr.mxu0 0.0
    %668 = vmatpush1.msra.mxu0 %v642
    %669 = vmatprep.subr.mxu0 0.0
    %670 = vmatpush1.msra.mxu0 %v643
    %671 = vmatprep.subr.mxu0 0.0
    %672 = vmatpush1.msra.mxu0 %v644
    %673 = vmatprep.subr.mxu0 0.0
    %674 = vmatpush1.msra.mxu0 %v645
    %675 = vmatprep.subr.mxu0 0.0
    %676 = vmatpush1.msra.mxu0 %v646
    %677 = vmatprep.subr.mxu0 0.0
    %678 = vmatpush1.msra.mxu0 %v647
    %679 = vmatprep.subr.mxu0 0.0
    %680 = vmatpush1.msra.mxu0 %v648
    %681 = vmatprep.subr.mxu0 0.0
    %682 = vmatpush1.msra.mxu0 0.0
    %683 = vmatprep.subr.mxu0 0.0
    %684 = vmatpush1.msra.mxu0 0.0
    %685 = vmatprep.subr.mxu0 0.0
    %686 = vmatpush1.msra.mxu0 0.0
    %687 = vmatprep.subr.mxu0 0.0
    %688 = vmatpush1.msra.mxu0 0.0
    %689 = vmatprep.subr.mxu0 0.0
    %690 = vmatpush1.msra.mxu0 0.0
    %691 = vmatprep.subr.mxu0 0.0
    %692 = vmatpush1.msra.mxu0 0.0
    %693 = vmatprep.subr.mxu0 0.0
    %694 = vmatpush1.msra.mxu0 0.0
    %695 = vmatprep.subr.mxu0 0.0
    %696 = vmatpush1.msra.mxu0 0.0
    %697 = vmatprep.subr.mxu0 0.0
    %698 = vmatpush1.msra.mxu0 0.0
    %699 = vmatprep.subr.mxu0 0.0
    %700 = vmatpush1.msra.mxu0 0.0
    %701 = vmatprep.subr.mxu0 0.0
    %702 = vmatpush1.msra.mxu0 0.0
    %703 = vmatprep.subr.mxu0 0.0
    %704 = vmatpush1.msra.mxu0 0.0
    %705 = vmatprep.subr.mxu0 0.0
    %706 = vmatpush1.msra.mxu0 0.0
    %707 = vmatprep.subr.mxu0 0.0
    %708 = vmatpush1.msra.mxu0 0.0
    %709 = vmatprep.subr.mxu0 0.0
    %710 = vmatpush1.msra.mxu0 0.0
    %711 = vmatprep.subr.mxu0 0.0
    %712 = vmatpush1.msra.mxu0 0.0
    %713 = vmatprep.mubr.f32.mxu0 0.0
    %714 = vmatmul.mubr.f32.gmra.mrb[0].mxu0 %v628
    %v715 = vpop.f32.mrb[0].mxu0
    %v716 = vadd.f32 0.0, %v715
    %v717 = vpop.f32.mrb[0].mxu0
    %718 = vdwg.mxu0
    %v719 = vadd.f32 %v632, %v716
    %s720 = scalar_lea.vmem [#allocation4], 40
    %721 = vst [vmem:[%s720] sm:$0xff] %v719
    %s722 = scalar_lea.vmem [#allocation2], 40
    %v723 = vld [vmem:[%s722] sm:$0xff]
    %v724 = vld [vmem:[#allocation10] sm:$0xff]
    %v725 = vld [vmem:[#allocation10 + $0x8] sm:$0xff]
    %v726 = vld [vmem:[#allocation10 + $0x10] sm:$0xff]
    %v727 = vld [vmem:[#allocation10 + $0x18] sm:$0xff]
    %v728 = vld [vmem:[#allocation10 + $0x20] sm:$0xff]
    %v729 = vld [vmem:[#allocation10 + $0x28] sm:$0xff]
    %v730 = vld [vmem:[#allocation10 + $0x30] sm:$0xff]
    %v731 = vld [vmem:[#allocation10 + $0x38] sm:$0xff]
    %v732 = vld [vmem:[#allocation10 + $0x40] sm:$0xff]
    %v733 = vld [vmem:[#allocation10 + $0x48] sm:$0xff]
    %v734 = vld [vmem:[#allocation10 + $0x50] sm:$0xff]
    %v735 = vld [vmem:[#allocation10 + $0x58] sm:$0xff]
    %v736 = vld [vmem:[#allocation10 + $0x60] sm:$0xff]
    %v737 = vld [vmem:[#allocation10 + $0x68] sm:$0xff]
    %v738 = vld [vmem:[#allocation10 + $0x70] sm:$0xff]
    %v739 = vld [vmem:[#allocation10 + $0x78] sm:$0xff]
    %740 = vmatprep.subr.mxu0 0.0
    %741 = vmatpush1.msra.mxu0 %v724
    %742 = vmatprep.subr.mxu0 0.0
    %743 = vmatpush1.msra.mxu0 %v725
    %744 = vmatprep.subr.mxu0 0.0
    %745 = vmatpush1.msra.mxu0 %v726
    %746 = vmatprep.subr.mxu0 0.0
    %747 = vmatpush1.msra.mxu0 %v727
    %748 = vmatprep.subr.mxu0 0.0
    %749 = vmatpush1.msra.mxu0 %v728
    %750 = vmatprep.subr.mxu0 0.0
    %751 = vmatpush1.msra.mxu0 %v729
    %752 = vmatprep.subr.mxu0 0.0
    %753 = vmatpush1.msra.mxu0 %v730
    %754 = vmatprep.subr.mxu0 0.0
    %755 = vmatpush1.msra.mxu0 %v731
    %756 = vmatprep.subr.mxu0 0.0
    %757 = vmatpush1.msra.mxu0 %v732
    %758 = vmatprep.subr.mxu0 0.0
    %759 = vmatpush1.msra.mxu0 %v733
    %760 = vmatprep.subr.mxu0 0.0
    %761 = vmatpush1.msra.mxu0 %v734
    %762 = vmatprep.subr.mxu0 0.0
    %763 = vmatpush1.msra.mxu0 %v735
    %764 = vmatprep.subr.mxu0 0.0
    %765 = vmatpush1.msra.mxu0 %v736
    %766 = vmatprep.subr.mxu0 0.0
    %767 = vmatpush1.msra.mxu0 %v737
    %768 = vmatprep.subr.mxu0 0.0
    %769 = vmatpush1.msra.mxu0 %v738
    %770 = vmatprep.subr.mxu0 0.0
    %771 = vmatpush1.msra.mxu0 %v739
    %772 = vmatprep.subr.mxu0 0.0
    %773 = vmatpush1.msra.mxu0 0.0
    %774 = vmatprep.subr.mxu0 0.0
    %775 = vmatpush1.msra.mxu0 0.0
    %776 = vmatprep.subr.mxu0 0.0
    %777 = vmatpush1.msra.mxu0 0.0
    %778 = vmatprep.subr.mxu0 0.0
    %779 = vmatpush1.msra.mxu0 0.0
    %780 = vmatprep.subr.mxu0 0.0
    %781 = vmatpush1.msra.mxu0 0.0
    %782 = vmatprep.subr.mxu0 0.0
    %783 = vmatpush1.msra.mxu0 0.0
    %784 = vmatprep.subr.mxu0 0.0
    %785 = vmatpush1.msra.mxu0 0.0
    %786 = vmatprep.subr.mxu0 0.0
    %787 = vmatpush1.msra.mxu0 0.0
    %788 = vmatprep.subr.mxu0 0.0
    %789 = vmatpush1.msra.mxu0 0.0
    %790 = vmatprep.subr.mxu0 0.0
    %791 = vmatpush1.msra.mxu0 0.0
    %792 = vmatprep.subr.mxu0 0.0
    %793 = vmatpush1.msra.mxu0 0.0
    %794 = vmatprep.subr.mxu0 0.0
    %795 = vmatpush1.msra.mxu0 0.0
    %796 = vmatprep.subr.mxu0 0.0
    %797 = vmatpush1.msra.mxu0 0.0
    %798 = vmatprep.subr.mxu0 0.0
    %799 = vmatpush1.msra.mxu0 0.0
    %800 = vmatprep.subr.mxu0 0.0
    %801 = vmatpush1.msra.mxu0 0.0
    %802 = vmatprep.subr.mxu0 0.0
    %803 = vmatpush1.msra.mxu0 0.0
    %804 = vmatprep.mubr.f32.mxu0 0.0
    %805 = vmatmul.mubr.f32.gmra.mrb[0].mxu0 %v719
    %v806 = vpop.f32.mrb[0].mxu0
    %v807 = vadd.f32 0.0, %v806
    %v808 = vpop.f32.mrb[0].mxu0
    %809 = vdwg.mxu0
    %v810 = vadd.f32 %v723, %v807
    %s811 = scalar_lea.vmem [#allocation4], 48
    %812 = vst [vmem:[%s811] sm:$0xff] %v810
    %s813 = scalar_lea.vmem [#allocation2], 48
    %v814 = vld [vmem:[%s813] sm:$0xff]
    %v815 = vld [vmem:[#allocation10] sm:$0xff]
    %v816 = vld [vmem:[#allocation10 + $0x8] sm:$0xff]
    %v817 = vld [vmem:[#allocation10 + $0x10] sm:$0xff]
    %v818 = vld [vmem:[#allocation10 + $0x18] sm:$0xff]
    %v819 = vld [vmem:[#allocation10 + $0x20] sm:$0xff]
    %v820 = vld [vmem:[#allocation10 + $0x28] sm:$0xff]
    %v821 = vld [vmem:[#allocation10 + $0x30] sm:$0xff]
    %v822 = vld [vmem:[#allocation10 + $0x38] sm:$0xff]
    %v823 = vld [vmem:[#allocation10 + $0x40] sm:$0xff]
    %v824 = vld [vmem:[#allocation10 + $0x48] sm:$0xff]
    %v825 = vld [vmem:[#allocation10 + $0x50] sm:$0xff]
    %v826 = vld [vmem:[#allocation10 + $0x58] sm:$0xff]
    %v827 = vld [vmem:[#allocation10 + $0x60] sm:$0xff]
    %v828 = vld [vmem:[#allocation10 + $0x68] sm:$0xff]
    %v829 = vld [vmem:[#allocation10 + $0x70] sm:$0xff]
    %v830 = vld [vmem:[#allocation10 + $0x78] sm:$0xff]
    %831 = vmatprep.subr.mxu0 0.0
    %832 = vmatpush1.msra.mxu0 %v815
    %833 = vmatprep.subr.mxu0 0.0
    %834 = vmatpush1.msra.mxu0 %v816
    %835 = vmatprep.subr.mxu0 0.0
    %836 = vmatpush1.msra.mxu0 %v817
    %837 = vmatprep.subr.mxu0 0.0
    %838 = vmatpush1.msra.mxu0 %v818
    %839 = vmatprep.subr.mxu0 0.0
    %840 = vmatpush1.msra.mxu0 %v819
    %841 = vmatprep.subr.mxu0 0.0
    %842 = vmatpush1.msra.mxu0 %v820
    %843 = vmatprep.subr.mxu0 0.0
    %844 = vmatpush1.msra.mxu0 %v821
    %845 = vmatprep.subr.mxu0 0.0
    %846 = vmatpush1.msra.mxu0 %v822
    %847 = vmatprep.subr.mxu0 0.0
    %848 = vmatpush1.msra.mxu0 %v823
    %849 = vmatprep.subr.mxu0 0.0
    %850 = vmatpush1.msra.mxu0 %v824
    %851 = vmatprep.subr.mxu0 0.0
    %852 = vmatpush1.msra.mxu0 %v825
    %853 = vmatprep.subr.mxu0 0.0
    %854 = vmatpush1.msra.mxu0 %v826
    %855 = vmatprep.subr.mxu0 0.0
    %856 = vmatpush1.msra.mxu0 %v827
    %857 = vmatprep.subr.mxu0 0.0
    %858 = vmatpush1.msra.mxu0 %v828
    %859 = vmatprep.subr.mxu0 0.0
    %860 = vmatpush1.msra.mxu0 %v829
    %861 = vmatprep.subr.mxu0 0.0
    %862 = vmatpush1.msra.mxu0 %v830
    %863 = vmatprep.subr.mxu0 0.0
    %864 = vmatpush1.msra.mxu0 0.0
    %865 = vmatprep.subr.mxu0 0.0
    %866 = vmatpush1.msra.mxu0 0.0
    %867 = vmatprep.subr.mxu0 0.0
    %868 = vmatpush1.msra.mxu0 0.0
    %869 = vmatprep.subr.mxu0 0.0
    %870 = vmatpush1.msra.mxu0 0.0
    %871 = vmatprep.subr.mxu0 0.0
    %872 = vmatpush1.msra.mxu0 0.0
    %873 = vmatprep.subr.mxu0 0.0
    %874 = vmatpush1.msra.mxu0 0.0
    %875 = vmatprep.subr.mxu0 0.0
    %876 = vmatpush1.msra.mxu0 0.0
    %877 = vmatprep.subr.mxu0 0.0
    %878 = vmatpush1.msra.mxu0 0.0
    %879 = vmatprep.subr.mxu0 0.0
    %880 = vmatpush1.msra.mxu0 0.0
    %881 = vmatprep.subr.mxu0 0.0
    %882 = vmatpush1.msra.mxu0 0.0
    %883 = vmatprep.subr.mxu0 0.0
    %884 = vmatpush1.msra.mxu0 0.0
    %885 = vmatprep.subr.mxu0 0.0
    %886 = vmatpush1.msra.mxu0 0.0
    %887 = vmatprep.subr.mxu0 0.0
    %888 = vmatpush1.msra.mxu0 0.0
    %889 = vmatprep.subr.mxu0 0.0
    %890 = vmatpush1.msra.mxu0 0.0
    %891 = vmatprep.subr.mxu0 0.0
    %892 = vmatpush1.msra.mxu0 0.0
    %893 = vmatprep.subr.mxu0 0.0
    %894 = vmatpush1.msra.mxu0 0.0
    %895 = vmatprep.mubr.f32.mxu0 0.0
    %896 = vmatmul.mubr.f32.gmra.mrb[0].mxu0 %v810
    %v897 = vpop.f32.mrb[0].mxu0
    %v898 = vadd.f32 0.0, %v897
    %v899 = vpop.f32.mrb[0].mxu0
    %900 = vdwg.mxu0
    %v901 = vadd.f32 %v814, %v898
    %s902 = scalar_lea.vmem [#allocation4], 56
    %903 = vst [vmem:[%s902] sm:$0xff] %v901
    %s904 = scalar_lea.vmem [#allocation2], 56
    %v905 = vld [vmem:[%s904] sm:$0xff]
    %v906 = vld [vmem:[#allocation10] sm:$0xff]
    %v907 = vld [vmem:[#allocation10 + $0x8] sm:$0xff]
    %v908 = vld [vmem:[#allocation10 + $0x10] sm:$0xff]
    %v909 = vld [vmem:[#allocation10 + $0x18] sm:$0xff]
    %v910 = vld [vmem:[#allocation10 + $0x20] sm:$0xff]
    %v911 = vld [vmem:[#allocation10 + $0x28] sm:$0xff]
    %v912 = vld [vmem:[#allocation10 + $0x30] sm:$0xff]
    %v913 = vld [vmem:[#allocation10 + $0x38] sm:$0xff]
    %v914 = vld [vmem:[#allocation10 + $0x40] sm:$0xff]
    %v915 = vld [vmem:[#allocation10 + $0x48] sm:$0xff]
    %v916 = vld [vmem:[#allocation10 + $0x50] sm:$0xff]
    %v917 = vld [vmem:[#allocation10 + $0x58] sm:$0xff]
    %v918 = vld [vmem:[#allocation10 + $0x60] sm:$0xff]
    %v919 = vld [vmem:[#allocation10 + $0x68] sm:$0xff]
    %v920 = vld [vmem:[#allocation10 + $0x70] sm:$0xff]
    %v921 = vld [vmem:[#allocation10 + $0x78] sm:$0xff]
    %922 = vmatprep.subr.mxu0 0.0
    %923 = vmatpush1.msra.mxu0 %v906
    %924 = vmatprep.subr.mxu0 0.0
    %925 = vmatpush1.msra.mxu0 %v907
    %926 = vmatprep.subr.mxu0 0.0
    %927 = vmatpush1.msra.mxu0 %v908
    %928 = vmatprep.subr.mxu0 0.0
    %929 = vmatpush1.msra.mxu0 %v909
    %930 = vmatprep.subr.mxu0 0.0
    %931 = vmatpush1.msra.mxu0 %v910
    %932 = vmatprep.subr.mxu0 0.0
    %933 = vmatpush1.msra.mxu0 %v911
    %934 = vmatprep.subr.mxu0 0.0
    %935 = vmatpush1.msra.mxu0 %v912
    %936 = vmatprep.subr.mxu0 0.0
    %937 = vmatpush1.msra.mxu0 %v913
    %938 = vmatprep.subr.mxu0 0.0
    %939 = vmatpush1.msra.mxu0 %v914
    %940 = vmatprep.subr.mxu0 0.0
    %941 = vmatpush1.msra.mxu0 %v915
    %942 = vmatprep.subr.mxu0 0.0
    %943 = vmatpush1.msra.mxu0 %v916
    %944 = vmatprep.subr.mxu0 0.0
    %945 = vmatpush1.msra.mxu0 %v917
    %946 = vmatprep.subr.mxu0 0.0
    %947 = vmatpush1.msra.mxu0 %v918
    %948 = vmatprep.subr.mxu0 0.0
    %949 = vmatpush1.msra.mxu0 %v919
    %950 = vmatprep.subr.mxu0 0.0
    %951 = vmatpush1.msra.mxu0 %v920
    %952 = vmatprep.subr.mxu0 0.0
    %953 = vmatpush1.msra.mxu0 %v921
    %954 = vmatprep.subr.mxu0 0.0
    %955 = vmatpush1.msra.mxu0 0.0
    %956 = vmatprep.subr.mxu0 0.0
    %957 = vmatpush1.msra.mxu0 0.0
    %958 = vmatprep.subr.mxu0 0.0
    %959 = vmatpush1.msra.mxu0 0.0
    %960 = vmatprep.subr.mxu0 0.0
    %961 = vmatpush1.msra.mxu0 0.0
    %962 = vmatprep.subr.mxu0 0.0
    %963 = vmatpush1.msra.mxu0 0.0
    %964 = vmatprep.subr.mxu0 0.0
    %965 = vmatpush1.msra.mxu0 0.0
    %966 = vmatprep.subr.mxu0 0.0
    %967 = vmatpush1.msra.mxu0 0.0
    %968 = vmatprep.subr.mxu0 0.0
    %969 = vmatpush1.msra.mxu0 0.0
    %970 = vmatprep.subr.mxu0 0.0
    %971 = vmatpush1.msra.mxu0 0.0
    %972 = vmatprep.subr.mxu0 0.0
    %973 = vmatpush1.msra.mxu0 0.0
    %974 = vmatprep.subr.mxu0 0.0
    %975 = vmatpush1.msra.mxu0 0.0
    %976 = vmatprep.subr.mxu0 0.0
    %977 = vmatpush1.msra.mxu0 0.0
    %978 = vmatprep.subr.mxu0 0.0
    %979 = vmatpush1.msra.mxu0 0.0
    %980 = vmatprep.subr.mxu0 0.0
    %981 = vmatpush1.msra.mxu0 0.0
    %982 = vmatprep.subr.mxu0 0.0
    %983 = vmatpush1.msra.mxu0 0.0
    %984 = vmatprep.subr.mxu0 0.0
    %985 = vmatpush1.msra.mxu0 0.0
    %986 = vmatprep.mubr.f32.mxu0 0.0
    %987 = vmatmul.mubr.f32.gmra.mrb[0].mxu0 %v901
    %v988 = vpop.f32.mrb[0].mxu0
    %v989 = vadd.f32 0.0, %v988
    %v990 = vpop.f32.mrb[0].mxu0
    %991 = vdwg.mxu0
    %v992 = vadd.f32 %v905, %v989
    %993 = vst [vmem:[#allocation14] sm:$0xff] %v992
    %v994 = vld [vmem:[#allocation3] sm:$0xff]
    %v995 = vld [vmem:[#allocation3 + $0x8] sm:$0xff]
    %v996 = vld [vmem:[#allocation3 + $0x10] sm:$0xff]
    %v997 = vld [vmem:[#allocation3 + $0x18] sm:$0xff]
    %v998 = vld [vmem:[#allocation3 + $0x20] sm:$0xff]
    %v999 = vld [vmem:[#allocation3 + $0x28] sm:$0xff]
    %v1000 = vld [vmem:[#allocation3 + $0x30] sm:$0xff]
    %v1001 = vld [vmem:[#allocation3 + $0x38] sm:$0xff]
    %v1002 = vld [vmem:[#allocation4] sm:$0xff]
    %v1003 = vld [vmem:[#allocation4 + $0x8] sm:$0xff]
    %v1004 = vld [vmem:[#allocation4 + $0x10] sm:$0xff]
    %v1005 = vld [vmem:[#allocation4 + $0x18] sm:$0xff]
    %v1006 = vld [vmem:[#allocation4 + $0x20] sm:$0xff]
    %v1007 = vld [vmem:[#allocation4 + $0x28] sm:$0xff]
    %v1008 = vld [vmem:[#allocation4 + $0x30] sm:$0xff]
    %v1009 = vld [vmem:[#allocation4 + $0x38] sm:$0xff]
    %v1010 = vld [vmem:[#allocation11] sm:$0xff]
    %v1011 = vld [vmem:[#allocation11 + $0x8] sm:$0xff]
    %v1012 = vld [vmem:[#allocation11 + $0x10] sm:$0xff]
    %v1013 = vld [vmem:[#allocation11 + $0x18] sm:$0xff]
    %v1014 = vld [vmem:[#allocation11 + $0x20] sm:$0xff]
    %v1015 = vld [vmem:[#allocation11 + $0x28] sm:$0xff]
    %v1016 = vld [vmem:[#allocation11 + $0x30] sm:$0xff]
    %v1017 = vld [vmem:[#allocation11 + $0x38] sm:$0xff]
    %v1018 = vld [vmem:[#allocation11 + $0x40] sm:$0xff]
    %v1019 = vld [vmem:[#allocation11 + $0x48] sm:$0xff]
    %v1020 = vld [vmem:[#allocation11 + $0x50] sm:$0xff]
    %v1021 = vld [vmem:[#allocation11 + $0x58] sm:$0xff]
    %v1022 = vld [vmem:[#allocation11 + $0x60] sm:$0xff]
    %v1023 = vld [vmem:[#allocation11 + $0x68] sm:$0xff]
    %v1024 = vld [vmem:[#allocation11 + $0x70] sm:$0xff]
    %v1025 = vld [vmem:[#allocation11 + $0x78] sm:$0xff]
    %1026 = vmatprep.subr.mxu0 0.0
    %1027 = vmatpush1.msra.mxu0 %v1010
    %1028 = vmatprep.subr.mxu0 0.0
    %1029 = vmatpush1.msra.mxu0 %v1011
    %1030 = vmatprep.subr.mxu0 0.0
    %1031 = vmatpush1.msra.mxu0 %v1012
    %1032 = vmatprep.subr.mxu0 0.0
    %1033 = vmatpush1.msra.mxu0 %v1013
    %1034 = vmatprep.subr.mxu0 0.0
    %1035 = vmatpush1.msra.mxu0 %v1014
    %1036 = vmatprep.subr.mxu0 0.0
    %1037 = vmatpush1.msra.mxu0 %v1015
    %1038 = vmatprep.subr.mxu0 0.0
    %1039 = vmatpush1.msra.mxu0 %v1016
    %1040 = vmatprep.subr.mxu0 0.0
    %1041 = vmatpush1.msra.mxu0 %v1017
    %1042 = vmatprep.subr.mxu0 0.0
    %1043 = vmatpush1.msra.mxu0 %v1018
    %1044 = vmatprep.subr.mxu0 0.0
    %1045 = vmatpush1.msra.mxu0 %v1019
    %1046 = vmatprep.subr.mxu0 0.0
    %1047 = vmatpush1.msra.mxu0 %v1020
    %1048 = vmatprep.subr.mxu0 0.0
    %1049 = vmatpush1.msra.mxu0 %v1021
    %1050 = vmatprep.subr.mxu0 0.0
    %1051 = vmatpush1.msra.mxu0 %v1022
    %1052 = vmatprep.subr.mxu0 0.0
    %1053 = vmatpush1.msra.mxu0 %v1023
    %1054 = vmatprep.subr.mxu0 0.0
    %1055 = vmatpush1.msra.mxu0 %v1024
    %1056 = vmatprep.subr.mxu0 0.0
    %1057 = vmatpush1.msra.mxu0 %v1025
    %1058 = vmatprep.subr.mxu0 0.0
    %1059 = vmatpush1.msra.mxu0 0.0
    %1060 = vmatprep.subr.mxu0 0.0
    %1061 = vmatpush1.msra.mxu0 0.0
    %1062 = vmatprep.subr.mxu0 0.0
    %1063 = vmatpush1.msra.mxu0 0.0
    %1064 = vmatprep.subr.mxu0 0.0
    %1065 = vmatpush1.msra.mxu0 0.0
    %1066 = vmatprep.subr.mxu0 0.0
    %1067 = vmatpush1.msra.mxu0 0.0
    %1068 = vmatprep.subr.mxu0 0.0
    %1069 = vmatpush1.msra.mxu0 0.0
    %1070 = vmatprep.subr.mxu0 0.0
    %1071 = vmatpush1.msra.mxu0 0.0
    %1072 = vmatprep.subr.mxu0 0.0
    %1073 = vmatpush1.msra.mxu0 0.0
    %1074 = vmatprep.subr.mxu0 0.0
    %1075 = vmatpush1.msra.mxu0 0.0
    %1076 = vmatprep.subr.mxu0 0.0
    %1077 = vmatpush1.msra.mxu0 0.0
    %1078 = vmatprep.subr.mxu0 0.0
    %1079 = vmatpush1.msra.mxu0 0.0
    %1080 = vmatprep.subr.mxu0 0.0
    %1081 = vmatpush1.msra.mxu0 0.0
    %1082 = vmatprep.subr.mxu0 0.0
    %1083 = vmatpush1.msra.mxu0 0.0
    %1084 = vmatprep.subr.mxu0 0.0
    %1085 = vmatpush1.msra.mxu0 0.0
    %1086 = vmatprep.subr.mxu0 0.0
    %1087 = vmatpush1.msra.mxu0 0.0
    %1088 = vmatprep.subr.mxu0 0.0
    %1089 = vmatpush1.msra.mxu0 0.0
    %1090 = vmatprep.mubr.f32.mxu0 0.0
    %1091 = vmatmul.mubr.f32.gmra.mrb[0].mxu0 %v1002
    %v1092 = vpop.f32.mrb[0].mxu0
    %v1093 = vadd.f32 0.0, %v1092
    %v1094 = vpop.f32.mrb[0].mxu0
    %1095 = vmatprep.mubr.f32.mxu0 0.0
    %1096 = vmatmul.mubr.f32.gmra.mrb[0].mxu0 %v1003
    %v1097 = vpop.f32.mrb[0].mxu0
    %v1098 = vadd.f32 0.0, %v1097
    %v1099 = vpop.f32.mrb[0].mxu0
    %1100 = vmatprep.mubr.f32.mxu0 0.0
    %1101 = vmatmul.mubr.f32.gmra.mrb[0].mxu0 %v1004
    %v1102 = vpop.f32.mrb[0].mxu0
    %v1103 = vadd.f32 0.0, %v1102
    %v1104 = vpop.f32.mrb[0].mxu0
    %1105 = vmatprep.mubr.f32.mxu0 0.0
    %1106 = vmatmul.mubr.f32.gmra.mrb[0].mxu0 %v1005
    %v1107 = vpop.f32.mrb[0].mxu0
    %v1108 = vadd.f32 0.0, %v1107
    %v1109 = vpop.f32.mrb[0].mxu0
    %1110 = vmatprep.mubr.f32.mxu0 0.0
    %1111 = vmatmul.mubr.f32.gmra.mrb[0].mxu0 %v1006
    %v1112 = vpop.f32.mrb[0].mxu0
    %v1113 = vadd.f32 0.0, %v1112
    %v1114 = vpop.f32.mrb[0].mxu0
    %1115 = vmatprep.mubr.f32.mxu0 0.0
    %1116 = vmatmul.mubr.f32.gmra.mrb[0].mxu0 %v1007
    %v1117 = vpop.f32.mrb[0].mxu0
    %v1118 = vadd.f32 0.0, %v1117
    %v1119 = vpop.f32.mrb[0].mxu0
    %1120 = vmatprep.mubr.f32.mxu0 0.0
    %1121 = vmatmul.mubr.f32.gmra.mrb[0].mxu0 %v1008
    %v1122 = vpop.f32.mrb[0].mxu0
    %v1123 = vadd.f32 0.0, %v1122
    %v1124 = vpop.f32.mrb[0].mxu0
    %1125 = vmatprep.mubr.f32.mxu0 0.0
    %1126 = vmatmul.mubr.f32.gmra.mrb[0].mxu0 %v1009
    %v1127 = vpop.f32.mrb[0].mxu0
    %v1128 = vadd.f32 0.0, %v1127
    %v1129 = vpop.f32.mrb[0].mxu0
    %1130 = vdwg.mxu0
    %v1131 = vadd.f32 %v994, %v1093
    %v1132 = vadd.f32 %v995, %v1098
    %v1133 = vadd.f32 %v996, %v1103
    %v1134 = vadd.f32 %v997, %v1108
    %v1135 = vadd.f32 %v998, %v1113
    %v1136 = vadd.f32 %v999, %v1118
    %v1137 = vadd.f32 %v1000, %v1123
    %v1138 = vadd.f32 %v1001, %v1128
    %1139 = vmax.xlane.f32.xlu0 %v1131
    %v1140 = vpop.xlane.xlu0 %1139
    %1141 = vmax.xlane.f32.xlu0 %v1132
    %v1142 = vpop.xlane.xlu0 %1141
    %1143 = vmax.xlane.f32.xlu0 %v1133
    %v1144 = vpop.xlane.xlu0 %1143
    %1145 = vmax.xlane.f32.xlu0 %v1134
    %v1146 = vpop.xlane.xlu0 %1145
    %1147 = vmax.xlane.f32.xlu0 %v1135
    %v1148 = vpop.xlane.xlu0 %1147
    %1149 = vmax.xlane.f32.xlu0 %v1136
    %v1150 = vpop.xlane.xlu0 %1149
    %1151 = vmax.xlane.f32.xlu0 %v1137
    %v1152 = vpop.xlane.xlu0 %1151
    %1153 = vmax.xlane.f32.xlu0 %v1138
    %v1154 = vpop.xlane.xlu0 %1153
    %v1155 = vsub.f32 %v1131, %v1140
    %v1156 = vsub.f32 %v1132, %v1142
    %v1157 = vsub.f32 %v1133, %v1144
    %v1158 = vsub.f32 %v1134, %v1146
    %v1159 = vsub.f32 %v1135, %v1148
    %v1160 = vsub.f32 %v1136, %v1150
    %v1161 = vsub.f32 %v1137, %v1152
    %v1162 = vsub.f32 %v1138, %v1154
    %v1163 = vmul.f32 %v1155, 1.442695
    %v1164 = vpow.pop %v1163
    %v1165 = vmul.f32 %v1156, 1.442695
    %v1166 = vpow.pop %v1165
    %v1167 = vmul.f32 %v1157, 1.442695
    %v1168 = vpow.pop %v1167
    %v1169 = vmul.f32 %v1158, 1.442695
    %v1170 = vpow.pop %v1169
    %v1171 = vmul.f32 %v1159, 1.442695
    %v1172 = vpow.pop %v1171
    %v1173 = vmul.f32 %v1160, 1.442695
    %v1174 = vpow.pop %v1173
    %v1175 = vmul.f32 %v1161, 1.442695
    %v1176 = vpow.pop %v1175
    %v1177 = vmul.f32 %v1162, 1.442695
    %v1178 = vpow.pop %v1177
    %1179 = vadd.xlane.f32.xlu0 %v1164
    %v1180 = vpop.xlane.xlu0 %1179
    %1181 = vadd.xlane.f32.xlu0 %v1166
    %v1182 = vpop.xlane.xlu0 %1181
    %1183 = vadd.xlane.f32.xlu0 %v1168
    %v1184 = vpop.xlane.xlu0 %1183
    %1185 = vadd.xlane.f32.xlu0 %v1170
    %v1186 = vpop.xlane.xlu0 %1185
    %1187 = vadd.xlane.f32.xlu0 %v1172
    %v1188 = vpop.xlane.xlu0 %1187
    %1189 = vadd.xlane.f32.xlu0 %v1174
    %v1190 = vpop.xlane.xlu0 %1189
    %1191 = vadd.xlane.f32.xlu0 %v1176
    %v1192 = vpop.xlane.xlu0 %1191
    %1193 = vadd.xlane.f32.xlu0 %v1178
    %v1194 = vpop.xlane.xlu0 %1193
    %v1195 = vrcp.pop %v1180
    %v1196 = vrcp.pop %v1182
    %v1197 = vrcp.pop %v1184
    %v1198 = vrcp.pop %v1186
    %v1199 = vrcp.pop %v1188
    %v1200 = vrcp.pop %v1190
    %v1201 = vrcp.pop %v1192
    %v1202 = vrcp.pop %v1194
    %v1203 = vmul.f32 %v1180, %v1195
    %v1204 = vmul.f32 %v1182, %v1196
    %v1205 = vmul.f32 %v1184, %v1197
    %v1206 = vmul.f32 %v1186, %v1198
    %v1207 = vmul.f32 %v1188, %v1199
    %v1208 = vmul.f32 %v1190, %v1200
    %v1209 = vmul.f32 %v1192, %v1201
    %v1210 = vmul.f32 %v1194, %v1202
    %v1211 = vsub.f32 2.0, %v1203
    %v1212 = vsub.f32 2.0, %v1204
    %v1213 = vsub.f32 2.0, %v1205
    %v1214 = vsub.f32 2.0, %v1206
    %v1215 = vsub.f32 2.0, %v1207
    %v1216 = vsub.f32 2.0, %v1208
    %v1217 = vsub.f32 2.0, %v1209
    %v1218 = vsub.f32 2.0, %v1210
    %v1219 = vmul.f32 %v1195, %v1211
    %v1220 = vmul.f32 %v1196, %v1212
    %v1221 = vmul.f32 %v1197, %v1213
    %v1222 = vmul.f32 %v1198, %v1214
    %v1223 = vmul.f32 %v1199, %v1215
    %v1224 = vmul.f32 %v1200, %v1216
    %v1225 = vmul.f32 %v1201, %v1217
    %v1226 = vmul.f32 %v1202, %v1218
    %v1227 = vmul.f32 %v1164, %v1219
    %v1228 = vmul.f32 %v1166, %v1220
    %v1229 = vmul.f32 %v1168, %v1221
    %v1230 = vmul.f32 %v1170, %v1222
    %v1231 = vmul.f32 %v1172, %v1223
    %v1232 = vmul.f32 %v1174, %v1224
    %v1233 = vmul.f32 %v1176, %v1225
    %v1234 = vmul.f32 %v1178, %v1226
    %1235 = vst [vmem:[#allocation13] sm:$0xff] %v1227
    %1236 = vst [vmem:[#allocation13 + $0x8] sm:$0xff] %v1228
    %1237 = vst [vmem:[#allocation13 + $0x10] sm:$0xff] %v1229
    %1238 = vst [vmem:[#allocation13 + $0x18] sm:$0xff] %v1230
    %1239 = vst [vmem:[#allocation13 + $0x20] sm:$0xff] %v1231
    %1240 = vst [vmem:[#allocation13 + $0x28] sm:$0xff] %v1232
    %1241 = vst [vmem:[#allocation13 + $0x30] sm:$0xff] %v1233
    %1242 = vst [vmem:[#allocation13 + $0x38] sm:$0xff] %v1234
    // Predicated region
    $region46: #{tpu_custom_call.1} parent=1 // pred_check
      _
    $region47: #{tpu_custom_call.1} parent=1 // pred_check_branch
      %1244 = sbr.rel (0) target = $region49
    $region48: #{tpu_custom_call.1} parent=1 // pred_region
      %s1246 = ssub.s32 1024, 1024
      %1247 = vsyncadd [#allocation7], %s1246
      %s1248 = sshll.u32 [#allocation13], 4
      %s1249 = int_to_ptr.vmem [resolvable:$true] %s1248
      %1254 = dma.vmem_to_hbm [thread:$0]  %s1249, 1024, %s6, [#allocation7], 128, 128, 8
    $region49: #{tpu_custom_call.1} parent=1 // pred_fallthru
      _
    // Predicated region
    $region50: #{tpu_custom_call.1} parent=1 // pred_check
      _
    $region51: #{tpu_custom_call.1} parent=1 // pred_check_branch
      %1256 = sbr.rel (0) target = $region53
    $region52: #{tpu_custom_call.1} parent=1 // pred_region
      %s1258 = ssub.s32 128, 128
      %1259 = vsyncadd [#allocation15], %s1258
      %s1261 = sshll.u32 [#allocation14], 4
      %s1262 = int_to_ptr.vmem [resolvable:$true] %s1261
      %1264 = dma.vmem_to_hbm [thread:$0]  %s1262, 128, %s7, [#allocation15]
    $region53: #{tpu_custom_call.1} parent=1 // pred_fallthru
      _
    // Predicated region
    $region54: #{tpu_custom_call.1} parent=1 // pred_check
      _
    $region55: #{tpu_custom_call.1} parent=1 // pred_check_branch
      %1266 = sbr.rel (0) target = $region57
    $region56: #{tpu_custom_call.1} parent=1 // pred_region
      %1267 = dma.done [#allocation7], 1024
    $region57: #{tpu_custom_call.1} parent=1 // pred_fallthru
      _
    // Predicated region
    $region58: #{tpu_custom_call.1} parent=1 // pred_check
      _
    $region59: #{tpu_custom_call.1} parent=1 // pred_check_branch
      %1269 = sbr.rel (0) target = $region61
    $region60: #{tpu_custom_call.1} parent=1 // pred_region
      %1270 = dma.done [#allocation15], 128
    $region61: #{tpu_custom_call.1} parent=1 // pred_fallthru
      _
    %1271 = vsyncpa [#allocation6], 1
    %1272 = vsyncpa [#allocation9], 1
    %1273 = vsyncpa [#allocation12], 1
    %1274 = vsyncpa [#allocation7], 1
    %1275 = vsyncpa [#allocation15], 1

</llo_original>
